<compile_context>
chip_gen: v5e
topology: v5e:2x2
jax: 0.10.0
libtpu: 0.0.40
codegen_flags: <defaults>
</compile_context>

<pallas_src>
import functools

import jax
import jax.numpy as jnp
from jax.experimental import pallas as pl
from jax.experimental.pallas import tpu as pltpu

TINY = 1e-13  # CosineMatrixAttention.tiny_value_of_dtype(float32)


def _drmm_kernel(qe_ref, te_ref, qm_ref,
                 w1_ref, b1_ref, w2r_ref, b2_ref,
                 wg1_ref, bg1_ref, wg2r_ref, bg2_ref,
                 out_ref):
    TB, Lq, E = qe_ref.shape
    bins = w1_ref.shape[0]

    qe = qe_ref[...]                      # [TB, Lq, E]  (f32 or bf16, mask-multiplied)
    te = te_ref[...]                      # [TB, Ld, E]
    qm = qm_ref[...].reshape(TB, Lq)      # [TB, Lq]     f32 query attention mask

    qe32 = qe.astype(jnp.float32)
    te32 = te.astype(jnp.float32)

    # ---- cosine matrix: raw batched contraction on the MXU, normalize afterwards ----
    raw = jax.lax.dot_general(
        qe, te,
        dimension_numbers=(((2,), (2,)), ((0,), (0,))),
        preferred_element_type=jnp.float32)                                   # [TB, Lq, Ld]
    inv_q = 1.0 / (jnp.sqrt(jnp.sum(qe32 * qe32, axis=-1, keepdims=True)) + TINY)  # [TB,Lq,1]
    inv_d = (1.0 / (jnp.sqrt(jnp.sum(te32 * te32, axis=-1)) + TINY))[:, None, :]   # [TB,1,Ld]
    cos = raw * inv_q * inv_d                                                 # [TB, Lq, Ld]

    # ---- histogram over the doc axis (torch.histc, `bins` bins over [-1, 1]) ----
    # Per-bin compare on the lane-dense [TB, Lq, Ld] tile + lane reduce; no 3-D one-hot.
    width = 2.0 / bins
    cosc = jnp.clip(cos, -1.0, 1.0)   # fp overshoot lands in the edge bins
    bin_idx = jnp.minimum(
        jnp.floor((cosc + 1.0) / width).astype(jnp.int32), bins - 1)          # [TB, Lq, Ld]
    counts = [jnp.sum((bin_idx == b).astype(jnp.float32), axis=-1, keepdims=True)
              for b in range(bins)]                                           # bins x [TB,Lq,1]
    hist = jnp.concatenate(counts, axis=-1)                                   # [TB, Lq, bins]

    # ---- matching classifier: Linear(bins,bins) -> Tanh -> Linear(bins,1) -> Tanh ----
    loghist = jnp.log1p(hist.reshape(TB * Lq, bins))          # fold TB*Lq into matmul M
    h = jnp.tanh(jnp.dot(loghist, w1_ref[...],
                         preferred_element_type=jnp.float32) + b1_ref[...])   # [TB*Lq, bins]
    matches = jnp.tanh(
        jnp.sum(h.reshape(TB, Lq, bins) * w2r_ref[...], axis=-1) + b2_ref[...])  # [TB, Lq]

    # ---- query gate: Linear(E,E) -> Tanh -> Linear(E,1) -> Tanh ----
    g1 = jnp.tanh(jnp.dot(qe32.reshape(TB * Lq, E), wg1_ref[...],
                          preferred_element_type=jnp.float32) + bg1_ref[...])  # [TB*Lq, E]
    graw = jnp.tanh(
        jnp.sum(g1.reshape(TB, Lq, E) * wg2r_ref[...], axis=-1) + bg2_ref[...])  # [TB, Lq]

    # ---- MaskedSoftmax over query positions ----
    x_masked = jnp.where(qm > 0, graw, jnp.float32(-1e30))
    x_max = jnp.max(x_masked, axis=-1, keepdims=True)                          # [TB, 1]
    # Clamp only affects fully-padded rows (batch padding, gated to 0 anyway);
    # valid rows always have graw - x_max <= 2 and are bit-identical to the reference.
    x_exp = jnp.exp(jnp.minimum(graw - x_max, 20.0)) * qm
    denom = jnp.sum(x_exp, axis=-1, keepdims=True)
    gates = x_exp / jnp.maximum(denom, TINY)                                   # [TB, Lq]

    # ---- gated sum over query positions -> one lane-dense score row per grid step ----
    score = jnp.sum(matches * gates, axis=-1, keepdims=True)                   # [TB, 1]
    out_ref[...] = score.reshape(1, 1, TB)


def _full_spec(shape):
    return pl.BlockSpec(shape, lambda b: (0,) * len(shape))


def drmm_forward(q_ids, q_mask, d_ids, d_mask, params, *,
                 batch_block=8, embed_dtype=jnp.float32):
    """DRMM forward pass. Returns [B] relevance scores."""
    emb = params["embed"]
    B, Lq = q_ids.shape
    _, Ld = d_ids.shape
    E = emb.shape[1]
    bins = params["w1"].shape[0]

    # TB batch elements per grid step; pad B up to a multiple of TB.
    TB = max(1, min(batch_block, B))
    nblk = pl.cdiv(B, TB)
    Bp = nblk * TB
    pad = Bp - B
    if pad:
        q_ids = jnp.pad(q_ids, ((0, pad), (0, 0)))   # padded rows: token 0, mask 0
        d_ids = jnp.pad(d_ids, ((0, pad), (0, 0)))
        q_mask = jnp.pad(q_mask, ((0, pad), (0, 0)))
        d_mask = jnp.pad(d_mask, ((0, pad), (0, 0)))

    # Glue in plain JAX: embedding gather + attention-mask multiply.
    # TODO(synk): the embedding-table gather stays in XLA; a data-dependent row gather
    # has no rectangular BlockSpec and would need manual per-row DMA inside the kernel.
    q_emb = (emb[q_ids] * q_mask[..., None].astype(emb.dtype)).astype(embed_dtype)
    t_emb = (emb[d_ids] * d_mask[..., None].astype(emb.dtype)).astype(embed_dtype)
    qm = q_mask.astype(jnp.float32)[:, None, :]      # [Bp, 1, Lq]

    out = pl.pallas_call(
        _drmm_kernel,
        out_shape=jax.ShapeDtypeStruct((nblk, 1, TB), jnp.float32),
        grid_spec=pltpu.PrefetchScalarGridSpec(
            num_scalar_prefetch=0,
            grid=(nblk,),
            in_specs=[
                pl.BlockSpec((TB, Lq, E), lambda b: (b, 0, 0)),
                pl.BlockSpec((TB, Ld, E), lambda b: (b, 0, 0)),
                pl.BlockSpec((TB, 1, Lq), lambda b: (b, 0, 0)),
                _full_spec((bins, bins)), _full_spec((1, bins)),  # matching Linear 1
                _full_spec((1, bins)),    _full_spec((1, 1)),     # matching Linear 2 (row)
                _full_spec((E, E)),       _full_spec((1, E)),     # gate Linear 1
                _full_spec((1, E)),       _full_spec((1, 1)),     # gate Linear 2 (row)
            ],
            out_specs=pl.BlockSpec((1, 1, TB), lambda b: (b, 0, 0)),
        ),
        # Batch grid axis is independent -> shards across the 2 TensorCores on v7x.
        # At real shapes, also set vmem_limit_bytes and size TB against v7x's 64 MiB VMEM.
        compiler_params=pltpu.CompilerParams(
            dimension_semantics=("parallel",)),
    )(q_emb, t_emb, qm,
      params["w1"], params["b1"], params["w2"].T, params["b2"],
      params["wg1"], params["bg1"], params["wg2"].T, params["bg2"])

    return out.reshape(Bp)[:B]


def drmm_reference(q_ids, q_mask, d_ids, d_mask, params):
    """Pure-JAX reference mirroring the PyTorch forward."""
    emb = params["embed"]
    bins = params["w1"].shape[0]
    q_emb = emb[q_ids] * q_mask[..., None].astype(emb.dtype)
    t_emb = emb[d_ids] * d_mask[..., None].astype(emb.dtype)

    a_norm = q_emb / (jnp.linalg.norm(q_emb, axis=-1, keepdims=True) + TINY)
    b_norm = t_emb / (jnp.linalg.norm(t_emb, axis=-1, keepdims=True) + TINY)
    cos = jnp.einsum("bqe,bde->bqd", a_norm, b_norm)

    width = 2.0 / bins
    idx = jnp.minimum(jnp.floor((jnp.clip(cos, -1.0, 1.0) + 1.0) / width)
                      .astype(jnp.int32), bins - 1)
    hist = jnp.sum((idx[..., None] == jnp.arange(bins)).astype(jnp.float32), axis=2)

    h = jnp.tanh(jnp.log1p(hist) @ params["w1"] + params["b1"])
    matches = jnp.tanh(h @ params["w2"] + params["b2"])          # [B, Lq, 1]

    g1 = jnp.tanh(q_emb @ params["wg1"] + params["bg1"])
    graw = jnp.tanh(g1 @ params["wg2"] + params["bg2"])[..., 0]  # [B, Lq]

    qm = q_mask.astype(jnp.float32)
    x_masked = jnp.where(qm > 0, graw, -1e30)
    x_max = jnp.max(x_masked, axis=1, keepdims=True)
    x_exp = jnp.exp(graw - x_max) * qm
    gates = x_exp / jnp.sum(x_exp, axis=1, keepdims=True)        # [B, Lq]

    return jnp.sum(matches[..., 0] * gates, axis=1)              # [B]


def make_params(key, vocab, embed_dim, bin_count, unk_token=0):
    ks = jax.random.split(key, 9)
    s = 0.1
    embed = jax.random.normal(ks[0], (vocab, embed_dim), jnp.float32)
    embed = embed.at[unk_token].set(0.0)   # padding_idx row is zero in nn.Embedding
    return {
        "embed": embed,
        "w1": s * jax.random.normal(ks[1], (bin_count, bin_count), jnp.float32),
        "b1": s * jax.random.normal(ks[2], (1, bin_count), jnp.float32),
        "w2": s * jax.random.normal(ks[3], (bin_count, 1), jnp.float32),
        "b2": s * jax.random.normal(ks[4], (1, 1), jnp.float32),
        "wg1": s * jax.random.normal(ks[5], (embed_dim, embed_dim), jnp.float32),
        "bg1": s * jax.random.normal(ks[6], (1, embed_dim), jnp.float32),
        "wg2": s * jax.random.normal(ks[7], (embed_dim, 1), jnp.float32),
        "bg2": s * jax.random.normal(ks[8], (1, 1), jnp.float32),
    }


if __name__ == "__main__":
    B, Lq, Ld, E, V, BINS = 3, 8, 16, 32, 50, 8
    key = jax.random.PRNGKey(0)
    k_p, k_q, k_d = jax.random.split(key, 3)

    params = make_params(k_p, V, E, BINS, unk_token=0)

    q_ids = jax.random.randint(k_q, (B, Lq), 1, V)
    d_ids = jax.random.randint(k_d, (B, Ld), 1, V)
    # attention masks: trailing positions padded
    q_mask = (jnp.arange(Lq)[None, :] < jnp.array([[6], [8], [5]])).astype(jnp.float32)
    d_mask = (jnp.arange(Ld)[None, :] < jnp.array([[12], [16], [9]])).astype(jnp.float32)

    # TB=2 -> 2 grid steps (exercises batching, multi-step pipelining and batch padding).
    fwd = jax.jit(functools.partial(drmm_forward, batch_block=2))
    out = jax.block_until_ready(fwd(q_ids, q_mask, d_ids, d_mask, params))

    ref = drmm_reference(q_ids, q_mask, d_ids, d_mask, params)
    assert out.shape == (B,)
    assert jnp.allclose(out, ref, atol=1e-5, rtol=1e-4), (out, ref)

    # bf16 embedding tiles: halves HBM traffic; only smoke-tested (histogram binning is
    # discrete, so bf16 results can legitimately differ from the f32 reference).
    fwd_bf16 = jax.jit(functools.partial(drmm_forward, batch_block=2,
                                         embed_dtype=jnp.bfloat16))
    out_bf16 = jax.block_until_ready(fwd_bf16(q_ids, q_mask, d_ids, d_mask, params))
    assert out_bf16.shape == (B,)
    assert bool(jnp.all(jnp.isfinite(out_bf16)))

    print("KERNEL_OK")
</pallas_src>

<mosaic_0001>
module attributes {stable_mosaic.version = 11 : i64} {
  func.func @_drmm_kernel(%arg0: i32, %arg1: memref<2x8x32xf32, #tpu.memory_space<vmem>>, %arg2: memref<2x16x32xf32, #tpu.memory_space<vmem>>, %arg3: memref<2x1x8xf32, #tpu.memory_space<vmem>>, %arg4: memref<8x8xf32, #tpu.memory_space<vmem>>, %arg5: memref<1x8xf32, #tpu.memory_space<vmem>>, %arg6: memref<1x8xf32, #tpu.memory_space<vmem>>, %arg7: memref<1x1xf32, #tpu.memory_space<vmem>>, %arg8: memref<32x32xf32, #tpu.memory_space<vmem>>, %arg9: memref<1x32xf32, #tpu.memory_space<vmem>>, %arg10: memref<1x32xf32, #tpu.memory_space<vmem>>, %arg11: memref<1x1xf32, #tpu.memory_space<vmem>>, %arg12: memref<1x1x2xf32, #tpu.memory_space<vmem>>) attributes {dimension_semantics = [#tpu.dimension_semantics<parallel>], iteration_bounds = array<i64: 2>, scalar_prefetch = 0 : i64, scratch_operands = 0 : i64, tpu.core_type = #tpu.core_type<tc>, window_params = [{transform_indices = @transform_0, window_bounds = array<i64: 2, 8, 32>}, {transform_indices = @transform_1, window_bounds = array<i64: 2, 16, 32>}, {transform_indices = @transform_2, window_bounds = array<i64: 2, 1, 8>}, {pipeline_mode = #tpu.pipeline_mode<synchronous>, transform_indices = @transform_3, window_bounds = array<i64: 8, 8>}, {pipeline_mode = #tpu.pipeline_mode<synchronous>, transform_indices = @transform_4, window_bounds = array<i64: 1, 8>}, {pipeline_mode = #tpu.pipeline_mode<synchronous>, transform_indices = @transform_5, window_bounds = array<i64: 1, 8>}, {pipeline_mode = #tpu.pipeline_mode<synchronous>, transform_indices = @transform_6, window_bounds = array<i64: 1, 1>}, {pipeline_mode = #tpu.pipeline_mode<synchronous>, transform_indices = @transform_7, window_bounds = array<i64: 32, 32>}, {pipeline_mode = #tpu.pipeline_mode<synchronous>, transform_indices = @transform_8, window_bounds = array<i64: 1, 32>}, {pipeline_mode = #tpu.pipeline_mode<synchronous>, transform_indices = @transform_9, window_bounds = array<i64: 1, 32>}, {pipeline_mode = #tpu.pipeline_mode<synchronous>, transform_indices = @transform_10, window_bounds = array<i64: 1, 1>}, {transform_indices = @transform_11, window_bounds = array<i64: 1, 1, 2>}]} {
    %c0 = arith.constant 0 : index
    %c0_0 = arith.constant 0 : index
    %c0_1 = arith.constant 0 : index
    %0 = vector.load %arg1[%c0, %c0_0, %c0_1] : memref<2x8x32xf32, #tpu.memory_space<vmem>>, vector<2x8x32xf32>
    %c0_2 = arith.constant 0 : index
    %c0_3 = arith.constant 0 : index
    %c0_4 = arith.constant 0 : index
    %1 = vector.load %arg2[%c0_2, %c0_3, %c0_4] : memref<2x16x32xf32, #tpu.memory_space<vmem>>, vector<2x16x32xf32>
    %c0_5 = arith.constant 0 : index
    %c0_6 = arith.constant 0 : index
    %c0_7 = arith.constant 0 : index
    %2 = vector.load %arg3[%c0_5, %c0_6, %c0_7] : memref<2x1x8xf32, #tpu.memory_space<vmem>>, vector<2x1x8xf32>
    %3 = vector.shape_cast %2 : vector<2x1x8xf32> to vector<2x8xf32>
    %cst = arith.constant dense<0.000000e+00> : vector<2x8x16xf32>
    %4 = tpu.matmul %0, %1, %cst {dimension_numbers = #tpu.dot_dimension_numbers<[2], [2], [1], [1], [0, 0, 0, 1, 1, 1], [0], [0]>} : vector<2x8x32xf32>, vector<2x16x32xf32>, vector<2x8x16xf32> -> vector<2x8x16xf32>
    %5 = arith.mulf %0, %0 : vector<2x8x32xf32>
    %cst_8 = arith.constant dense<0.000000e+00> : vector<2x8xf32>
    %6 = vector.multi_reduction <add>, %5, %cst_8 [2] : vector<2x8x32xf32> to vector<2x8xf32>
    %7 = vector.shape_cast %6 : vector<2x8xf32> to vector<2x8x1xf32>
    %8 = math.sqrt %7 : vector<2x8x1xf32>
    %cst_9 = arith.constant 9.99999982E-14 : f32
    %9 = vector.broadcast %cst_9 : f32 to vector<2x8x1xf32>
    %10 = arith.addf %8, %9 : vector<2x8x1xf32>
    %cst_10 = arith.constant 1.000000e+00 : f32
    %11 = vector.broadcast %cst_10 : f32 to vector<2x8x1xf32>
    %12 = arith.divf %11, %10 : vector<2x8x1xf32>
    %13 = arith.mulf %1, %1 : vector<2x16x32xf32>
    %cst_11 = arith.constant dense<0.000000e+00> : vector<2x16xf32>
    %14 = vector.multi_reduction <add>, %13, %cst_11 [2] : vector<2x16x32xf32> to vector<2x16xf32>
    %15 = math.sqrt %14 : vector<2x16xf32>
    %cst_12 = arith.constant 9.99999982E-14 : f32
    %16 = vector.broadcast %cst_12 : f32 to vector<2x16xf32>
    %17 = arith.addf %15, %16 : vector<2x16xf32>
    %cst_13 = arith.constant 1.000000e+00 : f32
    %18 = vector.broadcast %cst_13 : f32 to vector<2x16xf32>
    %19 = arith.divf %18, %17 : vector<2x16xf32>
    %20 = vector.shape_cast %19 : vector<2x16xf32> to vector<2x1x16xf32>
    %21 = vector.broadcast %12 : vector<2x8x1xf32> to vector<2x8x16xf32>
    %22 = arith.mulf %4, %21 : vector<2x8x16xf32>
    %23 = vector.broadcast %20 : vector<2x1x16xf32> to vector<2x8x16xf32>
    %24 = arith.mulf %22, %23 : vector<2x8x16xf32>
    %cst_14 = arith.constant -1.000000e+00 : f32
    %cst_15 = arith.constant 1.000000e+00 : f32
    %25 = vector.broadcast %cst_14 : f32 to vector<2x8x16xf32>
    %26 = arith.maximumf %25, %24 : vector<2x8x16xf32>
    %27 = vector.broadcast %cst_15 : f32 to vector<2x8x16xf32>
    %28 = arith.minimumf %27, %26 : vector<2x8x16xf32>
    %cst_16 = arith.constant 1.000000e+00 : f32
    %29 = vector.broadcast %cst_16 : f32 to vector<2x8x16xf32>
    %30 = arith.addf %28, %29 : vector<2x8x16xf32>
    %cst_17 = arith.constant 2.500000e-01 : f32
    %31 = vector.broadcast %cst_17 : f32 to vector<2x8x16xf32>
    %32 = arith.divf %30, %31 : vector<2x8x16xf32>
    %33 = math.floor %32 : vector<2x8x16xf32>
    %34 = arith.fptosi %33 : vector<2x8x16xf32> to vector<2x8x16xi32>
    %c7_i32 = arith.constant 7 : i32
    %35 = vector.broadcast %c7_i32 : i32 to vector<2x8x16xi32>
    %36 = arith.minsi %34, %35 : vector<2x8x16xi32>
    %c0_i32 = arith.constant 0 : i32
    %37 = vector.broadcast %c0_i32 : i32 to vector<2x8x16xi32>
    %38 = arith.cmpi eq, %36, %37 : vector<2x8x16xi32>
    %39 = arith.extui %38 : vector<2x8x16xi1> to vector<2x8x16xi32>
    %40 = arith.sitofp %39 : vector<2x8x16xi32> to vector<2x8x16xf32>
    %cst_18 = arith.constant dense<0.000000e+00> : vector<2x8xf32>
    %41 = vector.multi_reduction <add>, %40, %cst_18 [2] : vector<2x8x16xf32> to vector<2x8xf32>
    %42 = vector.shape_cast %41 : vector<2x8xf32> to vector<2x8x1xf32>
    %c1_i32 = arith.constant 1 : i32
    %43 = vector.broadcast %c1_i32 : i32 to vector<2x8x16xi32>
    %44 = arith.cmpi eq, %36, %43 : vector<2x8x16xi32>
    %45 = arith.extui %44 : vector<2x8x16xi1> to vector<2x8x16xi32>
    %46 = arith.sitofp %45 : vector<2x8x16xi32> to vector<2x8x16xf32>
    %cst_19 = arith.constant dense<0.000000e+00> : vector<2x8xf32>
    %47 = vector.multi_reduction <add>, %46, %cst_19 [2] : vector<2x8x16xf32> to vector<2x8xf32>
    %48 = vector.shape_cast %47 : vector<2x8xf32> to vector<2x8x1xf32>
    %c2_i32 = arith.constant 2 : i32
    %49 = vector.broadcast %c2_i32 : i32 to vector<2x8x16xi32>
    %50 = arith.cmpi eq, %36, %49 : vector<2x8x16xi32>
    %51 = arith.extui %50 : vector<2x8x16xi1> to vector<2x8x16xi32>
    %52 = arith.sitofp %51 : vector<2x8x16xi32> to vector<2x8x16xf32>
    %cst_20 = arith.constant dense<0.000000e+00> : vector<2x8xf32>
    %53 = vector.multi_reduction <add>, %52, %cst_20 [2] : vector<2x8x16xf32> to vector<2x8xf32>
    %54 = vector.shape_cast %53 : vector<2x8xf32> to vector<2x8x1xf32>
    %c3_i32 = arith.constant 3 : i32
    %55 = vector.broadcast %c3_i32 : i32 to vector<2x8x16xi32>
    %56 = arith.cmpi eq, %36, %55 : vector<2x8x16xi32>
    %57 = arith.extui %56 : vector<2x8x16xi1> to vector<2x8x16xi32>
    %58 = arith.sitofp %57 : vector<2x8x16xi32> to vector<2x8x16xf32>
    %cst_21 = arith.constant dense<0.000000e+00> : vector<2x8xf32>
    %59 = vector.multi_reduction <add>, %58, %cst_21 [2] : vector<2x8x16xf32> to vector<2x8xf32>
    %60 = vector.shape_cast %59 : vector<2x8xf32> to vector<2x8x1xf32>
    %c4_i32 = arith.constant 4 : i32
    %61 = vector.broadcast %c4_i32 : i32 to vector<2x8x16xi32>
    %62 = arith.cmpi eq, %36, %61 : vector<2x8x16xi32>
    %63 = arith.extui %62 : vector<2x8x16xi1> to vector<2x8x16xi32>
    %64 = arith.sitofp %63 : vector<2x8x16xi32> to vector<2x8x16xf32>
    %cst_22 = arith.constant dense<0.000000e+00> : vector<2x8xf32>
    %65 = vector.multi_reduction <add>, %64, %cst_22 [2] : vector<2x8x16xf32> to vector<2x8xf32>
    %66 = vector.shape_cast %65 : vector<2x8xf32> to vector<2x8x1xf32>
    %c5_i32 = arith.constant 5 : i32
    %67 = vector.broadcast %c5_i32 : i32 to vector<2x8x16xi32>
    %68 = arith.cmpi eq, %36, %67 : vector<2x8x16xi32>
    %69 = arith.extui %68 : vector<2x8x16xi1> to vector<2x8x16xi32>
    %70 = arith.sitofp %69 : vector<2x8x16xi32> to vector<2x8x16xf32>
    %cst_23 = arith.constant dense<0.000000e+00> : vector<2x8xf32>
    %71 = vector.multi_reduction <add>, %70, %cst_23 [2] : vector<2x8x16xf32> to vector<2x8xf32>
    %72 = vector.shape_cast %71 : vector<2x8xf32> to vector<2x8x1xf32>
    %c6_i32 = arith.constant 6 : i32
    %73 = vector.broadcast %c6_i32 : i32 to vector<2x8x16xi32>
    %74 = arith.cmpi eq, %36, %73 : vector<2x8x16xi32>
    %75 = arith.extui %74 : vector<2x8x16xi1> to vector<2x8x16xi32>
    %76 = arith.sitofp %75 : vector<2x8x16xi32> to vector<2x8x16xf32>
    %cst_24 = arith.constant dense<0.000000e+00> : vector<2x8xf32>
    %77 = vector.multi_reduction <add>, %76, %cst_24 [2] : vector<2x8x16xf32> to vector<2x8xf32>
    %78 = vector.shape_cast %77 : vector<2x8xf32> to vector<2x8x1xf32>
    %c7_i32_25 = arith.constant 7 : i32
    %79 = vector.broadcast %c7_i32_25 : i32 to vector<2x8x16xi32>
    %80 = arith.cmpi eq, %36, %79 : vector<2x8x16xi32>
    %81 = arith.extui %80 : vector<2x8x16xi1> to vector<2x8x16xi32>
    %82 = arith.sitofp %81 : vector<2x8x16xi32> to vector<2x8x16xf32>
    %cst_26 = arith.constant dense<0.000000e+00> : vector<2x8xf32>
    %83 = vector.multi_reduction <add>, %82, %cst_26 [2] : vector<2x8x16xf32> to vector<2x8xf32>
    %84 = vector.shape_cast %83 : vector<2x8xf32> to vector<2x8x1xf32>
    %85 = tpu.concatenate %42, %48, %54, %60, %66, %72, %78, %84 in 2 : vector<2x8x1xf32>, vector<2x8x1xf32>, vector<2x8x1xf32>, vector<2x8x1xf32>, vector<2x8x1xf32>, vector<2x8x1xf32>, vector<2x8x1xf32>, vector<2x8x1xf32> -> vector<2x8x8xf32>
    %86 = vector.shape_cast %85 : vector<2x8x8xf32> to vector<16x8xf32>
    %87 = math.log1p %86 : vector<16x8xf32>
    %c0_27 = arith.constant 0 : index
    %c0_28 = arith.constant 0 : index
    %88 = vector.load %arg4[%c0_27, %c0_28] : memref<8x8xf32, #tpu.memory_space<vmem>>, vector<8x8xf32>
    %cst_29 = arith.constant dense<0.000000e+00> : vector<16x8xf32>
    %89 = tpu.matmul %87, %88, %cst_29 {dimension_numbers = #tpu.dot_dimension_numbers<[1], [0], [0], [1], [0, 0, 1, 1], [], []>} : vector<16x8xf32>, vector<8x8xf32>, vector<16x8xf32> -> vector<16x8xf32>
    %c0_30 = arith.constant 0 : index
    %c0_31 = arith.constant 0 : index
    %90 = vector.load %arg5[%c0_30, %c0_31] : memref<1x8xf32, #tpu.memory_space<vmem>>, vector<1x8xf32>
    %91 = vector.broadcast %90 : vector<1x8xf32> to vector<16x8xf32>
    %92 = arith.addf %89, %91 : vector<16x8xf32>
    %93 = math.tanh %92 : vector<16x8xf32>
    %94 = vector.shape_cast %93 : vector<16x8xf32> to vector<2x8x8xf32>
    %c0_32 = arith.constant 0 : index
    %c0_33 = arith.constant 0 : index
    %95 = vector.load %arg6[%c0_32, %c0_33] : memref<1x8xf32, #tpu.memory_space<vmem>>, vector<1x8xf32>
    %96 = vector.shape_cast %95 : vector<1x8xf32> to vector<1x1x8xf32>
    %97 = vector.broadcast %96 : vector<1x1x8xf32> to vector<2x8x8xf32>
    %98 = arith.mulf %94, %97 : vector<2x8x8xf32>
    %cst_34 = arith.constant dense<0.000000e+00> : vector<2x8xf32>
    %99 = vector.multi_reduction <add>, %98, %cst_34 [2] : vector<2x8x8xf32> to vector<2x8xf32>
    %c0_35 = arith.constant 0 : index
    %c0_36 = arith.constant 0 : index
    %100 = vector.load %arg7[%c0_35, %c0_36] : memref<1x1xf32, #tpu.memory_space<vmem>>, vector<1x1xf32>
    %101 = vector.broadcast %100 : vector<1x1xf32> to vector<2x8xf32>
    %102 = arith.addf %99, %101 : vector<2x8xf32>
    %103 = math.tanh %102 : vector<2x8xf32>
    %104 = vector.shape_cast %0 : vector<2x8x32xf32> to vector<16x32xf32>
    %c0_37 = arith.constant 0 : index
    %c0_38 = arith.constant 0 : index
    %105 = vector.load %arg8[%c0_37, %c0_38] : memref<32x32xf32, #tpu.memory_space<vmem>>, vector<32x32xf32>
    %cst_39 = arith.constant dense<0.000000e+00> : vector<16x32xf32>
    %106 = tpu.matmul %104, %105, %cst_39 {dimension_numbers = #tpu.dot_dimension_numbers<[1], [0], [0], [1], [0, 0, 1, 1], [], []>} : vector<16x32xf32>, vector<32x32xf32>, vector<16x32xf32> -> vector<16x32xf32>
    %c0_40 = arith.constant 0 : index
    %c0_41 = arith.constant 0 : index
    %107 = vector.load %arg9[%c0_40, %c0_41] : memref<1x32xf32, #tpu.memory_space<vmem>>, vector<1x32xf32>
    %108 = vector.broadcast %107 : vector<1x32xf32> to vector<16x32xf32>
    %109 = arith.addf %106, %108 : vector<16x32xf32>
    %110 = math.tanh %109 : vector<16x32xf32>
    %111 = vector.shape_cast %110 : vector<16x32xf32> to vector<2x8x32xf32>
    %c0_42 = arith.constant 0 : index
    %c0_43 = arith.constant 0 : index
    %112 = vector.load %arg10[%c0_42, %c0_43] : memref<1x32xf32, #tpu.memory_space<vmem>>, vector<1x32xf32>
    %113 = vector.shape_cast %112 : vector<1x32xf32> to vector<1x1x32xf32>
    %114 = vector.broadcast %113 : vector<1x1x32xf32> to vector<2x8x32xf32>
    %115 = arith.mulf %111, %114 : vector<2x8x32xf32>
    %cst_44 = arith.constant dense<0.000000e+00> : vector<2x8xf32>
    %116 = vector.multi_reduction <add>, %115, %cst_44 [2] : vector<2x8x32xf32> to vector<2x8xf32>
    %c0_45 = arith.constant 0 : index
    %c0_46 = arith.constant 0 : index
    %117 = vector.load %arg11[%c0_45, %c0_46] : memref<1x1xf32, #tpu.memory_space<vmem>>, vector<1x1xf32>
    %118 = vector.broadcast %117 : vector<1x1xf32> to vector<2x8xf32>
    %119 = arith.addf %116, %118 : vector<2x8xf32>
    %120 = math.tanh %119 : vector<2x8xf32>
    %cst_47 = arith.constant 0.000000e+00 : f32
    %121 = vector.broadcast %cst_47 : f32 to vector<2x8xf32>
    %122 = arith.cmpf ogt, %3, %121 : vector<2x8xf32>
    %cst_48 = arith.constant -1.000000e+30 : f32
    %123 = vector.broadcast %cst_48 : f32 to vector<2x8xf32>
    %124 = arith.select %122, %120, %123 : vector<2x8xi1>, vector<2x8xf32>
    %cst_49 = arith.constant dense<0xFF800000> : vector<2xf32>
    %125 = vector.multi_reduction <maximumf>, %124, %cst_49 [1] : vector<2x8xf32> to vector<2xf32>
    %126 = vector.shape_cast %125 : vector<2xf32> to vector<2x1xf32>
    %127 = vector.broadcast %126 : vector<2x1xf32> to vector<2x8xf32>
    %128 = arith.subf %120, %127 : vector<2x8xf32>
    %cst_50 = arith.constant 2.000000e+01 : f32
    %129 = vector.broadcast %cst_50 : f32 to vector<2x8xf32>
    %130 = arith.minimumf %128, %129 : vector<2x8xf32>
    %131 = math.exp %130 : vector<2x8xf32>
    %132 = arith.mulf %131, %3 : vector<2x8xf32>
    %cst_51 = arith.constant dense<0.000000e+00> : vector<2xf32>
    %133 = vector.multi_reduction <add>, %132, %cst_51 [1] : vector<2x8xf32> to vector<2xf32>
    %134 = vector.shape_cast %133 : vector<2xf32> to vector<2x1xf32>
    %cst_52 = arith.constant 9.99999982E-14 : f32
    %135 = vector.broadcast %cst_52 : f32 to vector<2x1xf32>
    %136 = arith.maximumf %134, %135 : vector<2x1xf32>
    %137 = vector.broadcast %136 : vector<2x1xf32> to vector<2x8xf32>
    %138 = arith.divf %132, %137 : vector<2x8xf32>
    %139 = arith.mulf %103, %138 : vector<2x8xf32>
    %cst_53 = arith.constant dense<0.000000e+00> : vector<2xf32>
    %140 = vector.multi_reduction <add>, %139, %cst_53 [1] : vector<2x8xf32> to vector<2xf32>
    %141 = vector.shape_cast %140 : vector<2xf32> to vector<2x1xf32>
    %142 = vector.shape_cast %141 : vector<2x1xf32> to vector<1x1x2xf32>
    %c0_54 = arith.constant 0 : index
    %c0_55 = arith.constant 0 : index
    %c0_56 = arith.constant 0 : index
    %143 = vector.load %arg12[%c0_54, %c0_55, %c0_56] : memref<1x1x2xf32, #tpu.memory_space<vmem>>, vector<1x1x2xf32>
    tpu.vector_store %arg12[%c0_54, %c0_55, %c0_56], %142 {strides = array<i32>} : memref<1x1x2xf32, #tpu.memory_space<vmem>>, vector<1x1x2xf32>,
    return
  }
  func.func @transform_0(%arg0: i32) -> (i32, i32, i32) {
    %c0_i32 = arith.constant 0 : i32
    %c0_i32_0 = arith.constant 0 : i32
    %c0_i32_1 = arith.constant 0 : i32
    return %arg0, %c0_i32, %c0_i32_0 : i32, i32, i32
  }
  func.func @transform_1(%arg0: i32) -> (i32, i32, i32) {
    %c0_i32 = arith.constant 0 : i32
    %c0_i32_0 = arith.constant 0 : i32
    %c0_i32_1 = arith.constant 0 : i32
    return %arg0, %c0_i32, %c0_i32_0 : i32, i32, i32
  }
  func.func @transform_2(%arg0: i32) -> (i32, i32, i32) {
    %c0_i32 = arith.constant 0 : i32
    %c0_i32_0 = arith.constant 0 : i32
    %c0_i32_1 = arith.constant 0 : i32
    return %arg0, %c0_i32, %c0_i32_0 : i32, i32, i32
  }
  func.func @transform_3(%arg0: i32) -> (i32, i32) {
    %c0_i32 = arith.constant 0 : i32
    %c0_i32_0 = arith.constant 0 : i32
    %c0_i32_1 = arith.constant 0 : i32
    return %c0_i32, %c0_i32_0 : i32, i32
  }
  func.func @transform_4(%arg0: i32) -> (i32, i32) {
    %c0_i32 = arith.constant 0 : i32
    %c0_i32_0 = arith.constant 0 : i32
    %c0_i32_1 = arith.constant 0 : i32
    return %c0_i32, %c0_i32_0 : i32, i32
  }
  func.func @transform_5(%arg0: i32) -> (i32, i32) {
    %c0_i32 = arith.constant 0 : i32
    %c0_i32_0 = arith.constant 0 : i32
    %c0_i32_1 = arith.constant 0 : i32
    return %c0_i32, %c0_i32_0 : i32, i32
  }
  func.func @transform_6(%arg0: i32) -> (i32, i32) {
    %c0_i32 = arith.constant 0 : i32
    %c0_i32_0 = arith.constant 0 : i32
    %c0_i32_1 = arith.constant 0 : i32
    return %c0_i32, %c0_i32_0 : i32, i32
  }
  func.func @transform_7(%arg0: i32) -> (i32, i32) {
    %c0_i32 = arith.constant 0 : i32
    %c0_i32_0 = arith.constant 0 : i32
    %c0_i32_1 = arith.constant 0 : i32
    return %c0_i32, %c0_i32_0 : i32, i32
  }
  func.func @transform_8(%arg0: i32) -> (i32, i32) {
    %c0_i32 = arith.constant 0 : i32
    %c0_i32_0 = arith.constant 0 : i32
    %c0_i32_1 = arith.constant 0 : i32
    return %c0_i32, %c0_i32_0 : i32, i32
  }
  func.func @transform_9(%arg0: i32) -> (i32, i32) {
    %c0_i32 = arith.constant 0 : i32
    %c0_i32_0 = arith.constant 0 : i32
    %c0_i32_1 = arith.constant 0 : i32
    return %c0_i32, %c0_i32_0 : i32, i32
  }
  func.func @transform_10(%arg0: i32) -> (i32, i32) {
    %c0_i32 = arith.constant 0 : i32
    %c0_i32_0 = arith.constant 0 : i32
    %c0_i32_1 = arith.constant 0 : i32
    return %c0_i32, %c0_i32_0 : i32, i32
  }
  func.func @transform_11(%arg0: i32) -> (i32, i32, i32) {
    %c0_i32 = arith.constant 0 : i32
    %c0_i32_0 = arith.constant 0 : i32
    %c0_i32_1 = arith.constant 0 : i32
    return %arg0, %c0_i32, %c0_i32_0 : i32, i32, i32
  }
}

</mosaic_0001>

<llo_original>
// kernel: drmm_forward.1
$region0: #{drmm_forward.1}
  #allocation0 [shape = 'u32[]', space=smem, size = 0x4, offset = 0x4, fixed_abs, tag = 'smem constant byte address 0x4 - core index']
  #allocation1 [shape = 'u32[72,128]{1,0:T(1,128)}', space=vmem, size = 0x9000, scoped, tag = 'internal scratch']
  #allocation2 [shape = 'f32[1,1]{1,0:T(1,128)S(1)}', space=vmem, size = 0x200, scoped, tag = 'scoped memory for drmm_forward.1']
  #allocation3 [shape = 'f32[1,1]{1,0:T(1,128)S(1)}', space=vmem, size = 0x200, scoped, tag = 'scoped memory for drmm_forward.1']
  %s0 = inlined_call_operand.vmem [shape: f32[4,8,32], index: 0, kind: input, shape index: {}]
  %s1 = inlined_call_operand.vmem [shape: f32[4,16,32], index: 1, kind: input, shape index: {}]
  %s2 = inlined_call_operand.vmem [shape: f32[4,1,8], index: 2, kind: input, shape index: {}]
  %s3 = inlined_call_operand.vmem [shape: f32[8,8], index: 3, kind: input, shape index: {}]
  %s4 = inlined_call_operand.vmem [shape: f32[1,8], index: 4, kind: input, shape index: {}]
  %s5 = inlined_call_operand.vmem [shape: f32[1,8], index: 5, kind: input, shape index: {}]
  %s6 = inlined_call_operand.<no memory space> [shape: f32[1,1], index: 6, kind: input, shape index: {}]
  %s7 = inlined_call_operand.vmem [shape: f32[32,32], index: 7, kind: input, shape index: {}]
  %s8 = inlined_call_operand.vmem [shape: f32[1,32], index: 8, kind: input, shape index: {}]
  %s9 = inlined_call_operand.vmem [shape: f32[1,32], index: 9, kind: input, shape index: {}]
  %s10 = inlined_call_operand.<no memory space> [shape: f32[1,1], index: 10, kind: input, shape index: {}]
  %s11 = inlined_call_operand.vmem [shape: f32[2,1,2], index: 11, kind: output, shape index: {}]
  %s12 = sld [smem:[#allocation0]]
  $region77: #{drmm_forward.1} parent=0
    _
  %s14 = ssub.s32 1, %s12
  %s15 = scalar_select 0, %s14, %s12
  %v16 = vstv %s6
  %17 = vst [vmem:[#allocation2] sm:$0x1] %v16
  %v18 = vstv %s10
  %19 = vst [vmem:[#allocation3] sm:$0x1] %v18
  loop: start=0, step=1, limit=4
  $region2: #{drmm_forward.1} parent=0 // loop_pre_header
    _
  $region3: #{drmm_forward.1} parent=0 // loop_header
    %s21 = sphi 0, %s25
    %p22 = scmp.ge.s32.totalorder %s21, 4
    %s31 = sphi 0, %s33
    %s34 = sphi 0, %s31
    %s35 = sphi 0, %s34
    %s51 = sphi 0, %s35
    %s57 = sphi 0, %s59
    %s60 = sphi 0, %s57
    %s61 = sphi 0, %s60
    %s77 = sphi 0, %s61
    %s83 = sphi 0, %s85
    %s86 = sphi 0, %s83
    %s87 = sphi 0, %s86
    %s103 = sphi 0, %s87
    %s107 = sphi 0, %s107
    %s109 = sphi 0, %s107
    %s110 = sphi 0, %s109
    %s124 = sphi 0, %s110
    %s128 = sphi 0, %s128
    %s130 = sphi 0, %s128
    %s131 = sphi 0, %s130
    %s145 = sphi 0, %s131
    %s149 = sphi 0, %s149
    %s151 = sphi 0, %s149
    %s152 = sphi 0, %s151
    %s166 = sphi 0, %s152
    %s170 = sphi 0, %s170
    %s172 = sphi 0, %s170
    %s173 = sphi 0, %s172
    %s187 = sphi 0, %s173
    %s191 = sphi 0, %s191
    %s193 = sphi 0, %s191
    %s194 = sphi 0, %s193
    %s208 = sphi 0, %s194
    %s212 = sphi 0, %s212
    %s214 = sphi 0, %s212
    %s215 = sphi 0, %s214
    %s229 = sphi 0, %s215
    %s233 = sphi 0, %s233
    %s235 = sphi 0, %s233
    %s236 = sphi 0, %s235
    %s250 = sphi 0, %s236
    %s254 = sphi 0, %s254
    %s256 = sphi 0, %s254
    %s257 = sphi 0, %s256
    %s271 = sphi 0, %s257
    %s277 = sphi 0, %s279
    %s280 = sphi 0, %s277
    %s281 = sphi 0, %s280
    %s297 = sphi 0, %s281
  $region4: #{drmm_forward.1} parent=0 // loop_header_branch
    %24 = sbr.rel (%p22) target = $region8
  $region5: #{drmm_forward.1} parent=0 // loop_body
    %s26 = ssub.s32 %s21, 1
    %s27 = ssub.s32 %s21, 2
    %s28 = sadd.s32 %s21, 1
    %s29 = ssub.s32 %s21, %s28
    %p30 = scmp.eq.s32.totalorder %s29, 0
    %s32 = sadd.s32 %s31, 1
    %s33 = scalar_select %p30, %s31, %s32
    %p36 = pneg %p30
    %p37 = scmp.eq.s32.totalorder %s21, 1
    %p38 = por %p36, %p37
    %p39 = scmp.ne.s32.totalorder %s31, %s34
    %p40 = scmp.eq.s32.totalorder %s21, 0
    %p41 = por %p39, %p40
    %p42 = scmp.ne.s32.totalorder %s31, %s34
    %p43 = scmp.eq.s32.totalorder %s26, 1
    %p44 = por %p42, %p43
    %p45 = scmp.ne.s32.totalorder %s34, %s35
    %p46 = scmp.eq.s32.totalorder %s26, 0
    %p47 = por %p45, %p46
    %p48 = scmp.ne.s32.totalorder %s34, %s35
    %p49 = scmp.eq.s32.totalorder %s27, 1
    %p50 = por %p48, %p49
    %p52 = scmp.ne.s32.totalorder %s35, %s51
    %p53 = scmp.eq.s32.totalorder %s27, 0
    %p54 = por %p52, %p53
    %s55 = ssub.s32 %s21, %s28
    %p56 = scmp.eq.s32.totalorder %s55, 0
    %s58 = sadd.s32 %s57, 1
    %s59 = scalar_select %p56, %s57, %s58
    %p62 = pneg %p56
    %p63 = scmp.eq.s32.totalorder %s21, 1
    %p64 = por %p62, %p63
    %p65 = scmp.ne.s32.totalorder %s57, %s60
    %p66 = scmp.eq.s32.totalorder %s21, 0
    %p67 = por %p65, %p66
    %p68 = scmp.ne.s32.totalorder %s57, %s60
    %p69 = scmp.eq.s32.totalorder %s26, 1
    %p70 = por %p68, %p69
    %p71 = scmp.ne.s32.totalorder %s60, %s61
    %p72 = scmp.eq.s32.totalorder %s26, 0
    %p73 = por %p71, %p72
    %p74 = scmp.ne.s32.totalorder %s60, %s61
    %p75 = scmp.eq.s32.totalorder %s27, 1
    %p76 = por %p74, %p75
    %p78 = scmp.ne.s32.totalorder %s61, %s77
    %p79 = scmp.eq.s32.totalorder %s27, 0
    %p80 = por %p78, %p79
    %s81 = ssub.s32 %s21, %s28
    %p82 = scmp.eq.s32.totalorder %s81, 0
    %s84 = sadd.s32 %s83, 1
    %s85 = scalar_select %p82, %s83, %s84
    %p88 = pneg %p82
    %p89 = scmp.eq.s32.totalorder %s21, 1
    %p90 = por %p88, %p89
    %p91 = scmp.ne.s32.totalorder %s83, %s86
    %p92 = scmp.eq.s32.totalorder %s21, 0
    %p93 = por %p91, %p92
    %p94 = scmp.ne.s32.totalorder %s83, %s86
    %p95 = scmp.eq.s32.totalorder %s26, 1
    %p96 = por %p94, %p95
    %p97 = scmp.ne.s32.totalorder %s86, %s87
    %p98 = scmp.eq.s32.totalorder %s26, 0
    %p99 = por %p97, %p98
    %p100 = scmp.ne.s32.totalorder %s86, %s87
    %p101 = scmp.eq.s32.totalorder %s27, 1
    %p102 = por %p100, %p101
    %p104 = scmp.ne.s32.totalorder %s87, %s103
    %p105 = scmp.eq.s32.totalorder %s27, 0
    %p106 = por %p104, %p105
    %s108 = sadd.s32 %s107, 1
    %p111 = scmp.eq.s32.totalorder %s21, 1
    %p112 = scmp.ne.s32.totalorder %s107, %s109
    %p113 = scmp.eq.s32.totalorder %s21, 0
    %p114 = por %p112, %p113
    %p115 = scmp.ne.s32.totalorder %s107, %s109
    %p116 = scmp.eq.s32.totalorder %s26, 1
    %p117 = por %p115, %p116
    %p118 = scmp.ne.s32.totalorder %s109, %s110
    %p119 = scmp.eq.s32.totalorder %s26, 0
    %p120 = por %p118, %p119
    %p121 = scmp.ne.s32.totalorder %s109, %s110
    %p122 = scmp.eq.s32.totalorder %s27, 1
    %p123 = por %p121, %p122
    %p125 = scmp.ne.s32.totalorder %s110, %s124
    %p126 = scmp.eq.s32.totalorder %s27, 0
    %p127 = por %p125, %p126
    %s129 = sadd.s32 %s128, 1
    %p132 = scmp.eq.s32.totalorder %s21, 1
    %p133 = scmp.ne.s32.totalorder %s128, %s130
    %p134 = scmp.eq.s32.totalorder %s21, 0
    %p135 = por %p133, %p134
    %p136 = scmp.ne.s32.totalorder %s128, %s130
    %p137 = scmp.eq.s32.totalorder %s26, 1
    %p138 = por %p136, %p137
    %p139 = scmp.ne.s32.totalorder %s130, %s131
    %p140 = scmp.eq.s32.totalorder %s26, 0
    %p141 = por %p139, %p140
    %p142 = scmp.ne.s32.totalorder %s130, %s131
    %p143 = scmp.eq.s32.totalorder %s27, 1
    %p144 = por %p142, %p143
    %p146 = scmp.ne.s32.totalorder %s131, %s145
    %p147 = scmp.eq.s32.totalorder %s27, 0
    %p148 = por %p146, %p147
    %s150 = sadd.s32 %s149, 1
    %p153 = scmp.eq.s32.totalorder %s21, 1
    %p154 = scmp.ne.s32.totalorder %s149, %s151
    %p155 = scmp.eq.s32.totalorder %s21, 0
    %p156 = por %p154, %p155
    %p157 = scmp.ne.s32.totalorder %s149, %s151
    %p158 = scmp.eq.s32.totalorder %s26, 1
    %p159 = por %p157, %p158
    %p160 = scmp.ne.s32.totalorder %s151, %s152
    %p161 = scmp.eq.s32.totalorder %s26, 0
    %p162 = por %p160, %p161
    %p163 = scmp.ne.s32.totalorder %s151, %s152
    %p164 = scmp.eq.s32.totalorder %s27, 1
    %p165 = por %p163, %p164
    %p167 = scmp.ne.s32.totalorder %s152, %s166
    %p168 = scmp.eq.s32.totalorder %s27, 0
    %p169 = por %p167, %p168
    %s171 = sadd.s32 %s170, 1
    %p174 = scmp.eq.s32.totalorder %s21, 1
    %p175 = scmp.ne.s32.totalorder %s170, %s172
    %p176 = scmp.eq.s32.totalorder %s21, 0
    %p177 = por %p175, %p176
    %p178 = scmp.ne.s32.totalorder %s170, %s172
    %p179 = scmp.eq.s32.totalorder %s26, 1
    %p180 = por %p178, %p179
    %p181 = scmp.ne.s32.totalorder %s172, %s173
    %p182 = scmp.eq.s32.totalorder %s26, 0
    %p183 = por %p181, %p182
    %p184 = scmp.ne.s32.totalorder %s172, %s173
    %p185 = scmp.eq.s32.totalorder %s27, 1
    %p186 = por %p184, %p185
    %p188 = scmp.ne.s32.totalorder %s173, %s187
    %p189 = scmp.eq.s32.totalorder %s27, 0
    %p190 = por %p188, %p189
    %s192 = sadd.s32 %s191, 1
    %p195 = scmp.eq.s32.totalorder %s21, 1
    %p196 = scmp.ne.s32.totalorder %s191, %s193
    %p197 = scmp.eq.s32.totalorder %s21, 0
    %p198 = por %p196, %p197
    %p199 = scmp.ne.s32.totalorder %s191, %s193
    %p200 = scmp.eq.s32.totalorder %s26, 1
    %p201 = por %p199, %p200
    %p202 = scmp.ne.s32.totalorder %s193, %s194
    %p203 = scmp.eq.s32.totalorder %s26, 0
    %p204 = por %p202, %p203
    %p205 = scmp.ne.s32.totalorder %s193, %s194
    %p206 = scmp.eq.s32.totalorder %s27, 1
    %p207 = por %p205, %p206
    %p209 = scmp.ne.s32.totalorder %s194, %s208
    %p210 = scmp.eq.s32.totalorder %s27, 0
    %p211 = por %p209, %p210
    %s213 = sadd.s32 %s212, 1
    %p216 = scmp.eq.s32.totalorder %s21, 1
    %p217 = scmp.ne.s32.totalorder %s212, %s214
    %p218 = scmp.eq.s32.totalorder %s21, 0
    %p219 = por %p217, %p218
    %p220 = scmp.ne.s32.totalorder %s212, %s214
    %p221 = scmp.eq.s32.totalorder %s26, 1
    %p222 = por %p220, %p221
    %p223 = scmp.ne.s32.totalorder %s214, %s215
    %p224 = scmp.eq.s32.totalorder %s26, 0
    %p225 = por %p223, %p224
    %p226 = scmp.ne.s32.totalorder %s214, %s215
    %p227 = scmp.eq.s32.totalorder %s27, 1
    %p228 = por %p226, %p227
    %p230 = scmp.ne.s32.totalorder %s215, %s229
    %p231 = scmp.eq.s32.totalorder %s27, 0
    %p232 = por %p230, %p231
    %s234 = sadd.s32 %s233, 1
    %p237 = scmp.eq.s32.totalorder %s21, 1
    %p238 = scmp.ne.s32.totalorder %s233, %s235
    %p239 = scmp.eq.s32.totalorder %s21, 0
    %p240 = por %p238, %p239
    %p241 = scmp.ne.s32.totalorder %s233, %s235
    %p242 = scmp.eq.s32.totalorder %s26, 1
    %p243 = por %p241, %p242
    %p244 = scmp.ne.s32.totalorder %s235, %s236
    %p245 = scmp.eq.s32.totalorder %s26, 0
    %p246 = por %p244, %p245
    %p247 = scmp.ne.s32.totalorder %s235, %s236
    %p248 = scmp.eq.s32.totalorder %s27, 1
    %p249 = por %p247, %p248
    %p251 = scmp.ne.s32.totalorder %s236, %s250
    %p252 = scmp.eq.s32.totalorder %s27, 0
    %p253 = por %p251, %p252
    %s255 = sadd.s32 %s254, 1
    %p258 = scmp.eq.s32.totalorder %s21, 1
    %p259 = scmp.ne.s32.totalorder %s254, %s256
    %p260 = scmp.eq.s32.totalorder %s21, 0
    %p261 = por %p259, %p260
    %p262 = scmp.ne.s32.totalorder %s254, %s256
    %p263 = scmp.eq.s32.totalorder %s26, 1
    %p264 = por %p262, %p263
    %p265 = scmp.ne.s32.totalorder %s256, %s257
    %p266 = scmp.eq.s32.totalorder %s26, 0
    %p267 = por %p265, %p266
    %p268 = scmp.ne.s32.totalorder %s256, %s257
    %p269 = scmp.eq.s32.totalorder %s27, 1
    %p270 = por %p268, %p269
    %p272 = scmp.ne.s32.totalorder %s257, %s271
    %p273 = scmp.eq.s32.totalorder %s27, 0
    %p274 = por %p272, %p273
    %s275 = ssub.s32 %s21, %s28
    %p276 = scmp.eq.s32.totalorder %s275, 0
    %s278 = sadd.s32 %s277, 1
    %s279 = scalar_select %p276, %s277, %s278
    %p282 = pneg %p276
    %p283 = scmp.eq.s32.totalorder %s21, 1
    %p284 = por %p282, %p283
    %p285 = scmp.ne.s32.totalorder %s277, %s280
    %p286 = scmp.eq.s32.totalorder %s21, 0
    %p287 = por %p285, %p286
    %p288 = scmp.ne.s32.totalorder %s277, %s280
    %p289 = scmp.eq.s32.totalorder %s26, 1
    %p290 = por %p288, %p289
    %p291 = scmp.ne.s32.totalorder %s280, %s281
    %p292 = scmp.eq.s32.totalorder %s26, 0
    %p293 = por %p291, %p292
    %p294 = scmp.ne.s32.totalorder %s280, %s281
    %p295 = scmp.eq.s32.totalorder %s27, 1
    %p296 = por %p294, %p295
    %p298 = scmp.ne.s32.totalorder %s281, %s297
    %p299 = scmp.eq.s32.totalorder %s27, 0
    %p300 = por %p298, %p299
    %p301 = scmp.le.s32.totalorder 1, %s21
    %p302 = scmp.lt.s32.totalorder %s21, 3
    %p303 = pnand %p301, %p302
    %p304 = pneg %p303
    // Predicated region
    $region9: #{drmm_forward.1} parent=5 // pred_check
      _
    $region10: #{drmm_forward.1} parent=5 // pred_check_branch
      %306 = sbr.rel (%p303) target = $region12
    $region11: #{drmm_forward.1} parent=5 // pred_region
      %s307 = ssub.s32 %s21, 1
      // Predicated region
      $region13: #{drmm_forward.1} parent=11 // pred_check
        %p308 = pneg %p120
      $region14: #{drmm_forward.1} parent=11 // pred_check_branch
        %310 = sbr.rel (%p308) target = $region16
      $region15: #{drmm_forward.1} parent=11 // pred_region
        _
      $region16: #{drmm_forward.1} parent=11 // pred_fallthru
        _
      // Predicated region
      $region17: #{drmm_forward.1} parent=11 // pred_check
        %p311 = pneg %p141
      $region18: #{drmm_forward.1} parent=11 // pred_check_branch
        %313 = sbr.rel (%p311) target = $region20
      $region19: #{drmm_forward.1} parent=11 // pred_region
        _
      $region20: #{drmm_forward.1} parent=11 // pred_fallthru
        _
      // Predicated region
      $region21: #{drmm_forward.1} parent=11 // pred_check
        %p314 = pneg %p162
      $region22: #{drmm_forward.1} parent=11 // pred_check_branch
        %316 = sbr.rel (%p314) target = $region24
      $region23: #{drmm_forward.1} parent=11 // pred_region
        _
      $region24: #{drmm_forward.1} parent=11 // pred_fallthru
        _
      // Predicated region
      $region25: #{drmm_forward.1} parent=11 // pred_check
        %p317 = pneg %p183
      $region26: #{drmm_forward.1} parent=11 // pred_check_branch
        %319 = sbr.rel (%p317) target = $region28
      $region27: #{drmm_forward.1} parent=11 // pred_region
        _
      $region28: #{drmm_forward.1} parent=11 // pred_fallthru
        _
      // Predicated region
      $region29: #{drmm_forward.1} parent=11 // pred_check
        %p320 = pneg %p204
      $region30: #{drmm_forward.1} parent=11 // pred_check_branch
        %322 = sbr.rel (%p320) target = $region32
      $region31: #{drmm_forward.1} parent=11 // pred_region
        _
      $region32: #{drmm_forward.1} parent=11 // pred_fallthru
        _
      // Predicated region
      $region33: #{drmm_forward.1} parent=11 // pred_check
        %p323 = pneg %p225
      $region34: #{drmm_forward.1} parent=11 // pred_check_branch
        %325 = sbr.rel (%p323) target = $region36
      $region35: #{drmm_forward.1} parent=11 // pred_region
        _
      $region36: #{drmm_forward.1} parent=11 // pred_fallthru
        _
      // Predicated region
      $region37: #{drmm_forward.1} parent=11 // pred_check
        %p326 = pneg %p246
      $region38: #{drmm_forward.1} parent=11 // pred_check_branch
        %328 = sbr.rel (%p326) target = $region40
      $region39: #{drmm_forward.1} parent=11 // pred_region
        _
      $region40: #{drmm_forward.1} parent=11 // pred_fallthru
        _
      // Predicated region
      $region41: #{drmm_forward.1} parent=11 // pred_check
        %p329 = pneg %p267
      $region42: #{drmm_forward.1} parent=11 // pred_check_branch
        %331 = sbr.rel (%p329) target = $region44
      $region43: #{drmm_forward.1} parent=11 // pred_region
        _
      $region44: #{drmm_forward.1} parent=11 // pred_fallthru
        _
    $region12: #{drmm_forward.1} parent=5 // pred_fallthru
      _
    %p332 = scmp.lt.s32.totalorder %s21, 2
    // Predicated region
    $region45: #{drmm_forward.1} parent=5 // pred_check
      %p333 = pneg %p332
    $region46: #{drmm_forward.1} parent=5 // pred_check_branch
      %335 = sbr.rel (%p333) target = $region48
    $region47: #{drmm_forward.1} parent=5 // pred_region
      // Predicated region
      $region49: #{drmm_forward.1} parent=47 // pred_check
        %p336 = pneg %p41
      $region50: #{drmm_forward.1} parent=47 // pred_check_branch
        %338 = sbr.rel (%p336) target = $region52
      $region51: #{drmm_forward.1} parent=47 // pred_region
        %s339 = smul.u32 2, %s21
        %p340 = scmp.lt.s32.totalorder %s339, 3
        %s341 = scalar_select %p340, %s339, 3
        %s342 = smul.addr %s341, 8
        %s343 = scalar_lea.vmem %s0, %s342
        %s344 = smul.u32 2, %s21
      $region52: #{drmm_forward.1} parent=47 // pred_fallthru
        _
      // Predicated region
      $region53: #{drmm_forward.1} parent=47 // pred_check
        %p345 = pneg %p67
      $region54: #{drmm_forward.1} parent=47 // pred_check_branch
        %347 = sbr.rel (%p345) target = $region56
      $region55: #{drmm_forward.1} parent=47 // pred_region
        %s348 = smul.u32 2, %s21
        %p349 = scmp.lt.s32.totalorder %s348, 3
        %s350 = scalar_select %p349, %s348, 3
        %s351 = smul.addr %s350, 2
        %s352 = smul.addr %s351, 8
        %s353 = scalar_lea.vmem %s1, %s352
        %s354 = smul.u32 2, %s21
      $region56: #{drmm_forward.1} parent=47 // pred_fallthru
        _
      // Predicated region
      $region57: #{drmm_forward.1} parent=47 // pred_check
        %p355 = pneg %p93
      $region58: #{drmm_forward.1} parent=47 // pred_check_branch
        %357 = sbr.rel (%p355) target = $region60
      $region59: #{drmm_forward.1} parent=47 // pred_region
        %s358 = smul.u32 2, %s21
        %p359 = scmp.lt.s32.totalorder %s358, 3
        %s360 = scalar_select %p359, %s358, 3
        %s361 = scalar_lea.vmem %s2, %s360
        %s362 = smul.u32 2, %s21
      $region60: #{drmm_forward.1} parent=47 // pred_fallthru
        _
    $region48: #{drmm_forward.1} parent=5 // pred_fallthru
      _
    %p363 = scmp.le.s32.totalorder 1, %s21
    %p364 = scmp.lt.s32.totalorder %s21, 3
    %p365 = pnand %p363, %p364
    %p366 = pneg %p365
    // Predicated region
    $region61: #{drmm_forward.1} parent=5 // pred_check
      _
    $region62: #{drmm_forward.1} parent=5 // pred_check_branch
      %368 = sbr.rel (%p365) target = $region64
    $region63: #{drmm_forward.1} parent=5 // pred_region
      %s369 = ssub.s32 %s21, 1
      %s370 = smul.u32 2, %s26
      %p371 = scmp.lt.s32.totalorder %s370, 3
      %s372 = scalar_select %p371, %s370, 3
      %s373 = smul.addr %s372, 8
      %s374 = scalar_lea.vmem %s0, %s373
      %p375 = pneg %p47
      %p376 = pneg %p44
      %s377 = smul.u32 2, %s26
      %p378 = scmp.lt.s32.totalorder %s377, 3
      %s379 = scalar_select %p378, %s377, 3
      %s380 = smul.addr %s379, 2
      %s381 = smul.addr %s380, 8
      %s382 = scalar_lea.vmem %s1, %s381
      %p383 = pneg %p73
      %p384 = pneg %p70
      %s385 = smul.u32 2, %s26
      %p386 = scmp.lt.s32.totalorder %s385, 3
      %s387 = scalar_select %p386, %s385, 3
      %s388 = scalar_lea.vmem %s2, %s387
      %p389 = pneg %p99
      %p390 = pneg %p96
      %p391 = pneg %p120
      %p392 = pneg %p117
      %p393 = pneg %p141
      %p394 = pneg %p138
      %p395 = pneg %p162
      %p396 = pneg %p159
      %p397 = pneg %p183
      %p398 = pneg %p180
      %p399 = pneg %p204
      %p400 = pneg %p201
      %p401 = pneg %p225
      %p402 = pneg %p222
      %p403 = pneg %p246
      %p404 = pneg %p243
      %p405 = pneg %p267
      %p406 = pneg %p264
      %p407 = pneg %p293
      %p408 = pneg %p290
      %p409 = scmp.lt.s32.totalorder %s26, 1
      %s410 = scalar_select %p409, %s26, 1
      %s411 = scalar_lea.vmem %s11, %s410
      %s412 = smul.u32 2, %s26
      %p413 = scmp.lt.s32.totalorder %s412, 3
      %s414 = scalar_select %p413, %s412, 3
      %s415 = smul.addr %s414, 8
      %s416 = scalar_lea.vmem %s0, %s415
      %s417 = smul.u32 2, %s26
      %s418 = smul.u32 2, %s26
      %p419 = scmp.lt.s32.totalorder %s418, 3
      %s420 = scalar_select %p419, %s418, 3
      %s421 = smul.addr %s420, 2
      %s422 = smul.addr %s421, 8
      %s423 = scalar_lea.vmem %s1, %s422
      %s424 = smul.u32 2, %s26
      %s425 = smul.u32 2, %s26
      %p426 = scmp.lt.s32.totalorder %s425, 3
      %s427 = scalar_select %p426, %s425, 3
      %s428 = scalar_lea.vmem %s2, %s427
      %s429 = smul.u32 2, %s26
      %p430 = scmp.lt.s32.totalorder %s26, 1
      %s431 = scalar_select %p430, %s26, 1
      %s432 = scalar_lea.vmem %s11, %s431
      %v433 = vld [vmem:[%s416] sm:$0xff]
      %v434 = vld [vmem:[%s416 + $0x8] sm:$0xff]
      %v435 = vld [vmem:[%s423] sm:$0xff]
      %v436 = vld [vmem:[%s423 + $0x8] sm:$0xff]
      %v437 = vld [vmem:[%s423 + $0x10] sm:$0xff]
      %v438 = vld [vmem:[%s423 + $0x18] sm:$0xff]
      %v439 = vld [vmem:[%s428] sm:$0x1]
      %v440 = vld [vmem:[%s428 + $0x1] sm:$0x1]
      %vm441 = vcmask 261120
      %v443 = vsel %vm441, %v433, 0
      %v446 = vsel %vm441, %v435, 0
      %v449 = vsel %vm441, %v436, 0
      %451 = vmatpush.xpose.msra.mxu0 0.0
      %452 = vmatpush.xpose.msra.mxu0 0.0
      %453 = vmatpush.xpose.msra.mxu0 0.0
      %454 = vmatpush.xpose.msra.mxu0 0.0
      %455 = vmatpush.xpose.msra.mxu0 0.0
      %456 = vmatpush.xpose.msra.mxu0 0.0
      %457 = vmatpush.xpose.msra.mxu0 0.0
      %458 = vmatpush.xpose.msra.mxu0 0.0
      %459 = vmatpush.xpose.msra.mxu0 0.0
      %460 = vmatpush.xpose.msra.mxu0 0.0
      %461 = vmatpush.xpose.msra.mxu0 0.0
      %462 = vmatpush.xpose.msra.mxu0 0.0
      %463 = vmatpush.xpose.msra.mxu0 0.0
      %464 = vmatpush.xpose.msra.mxu0 0.0
      %465 = vmatpush.xpose.msra.mxu0 %v449
      %466 = vmatpush.xpose.msra.mxu0 %v446
      %467 = vmatmul.f32.gmra.mxu0 %v443
      %v468 = vpop.f32.mrf.mxu0
      %v469 = vadd.f32 0.0, %v468
      %470 = vdwg.mxu0
      %v472 = vsel %vm441, %v434, 0
      %v475 = vsel %vm441, %v437, 0
      %v478 = vsel %vm441, %v438, 0
      %480 = vmatpush.xpose.msra.mxu0 0.0
      %481 = vmatpush.xpose.msra.mxu0 0.0
      %482 = vmatpush.xpose.msra.mxu0 0.0
      %483 = vmatpush.xpose.msra.mxu0 0.0
      %484 = vmatpush.xpose.msra.mxu0 0.0
      %485 = vmatpush.xpose.msra.mxu0 0.0
      %486 = vmatpush.xpose.msra.mxu0 0.0
      %487 = vmatpush.xpose.msra.mxu0 0.0
      %488 = vmatpush.xpose.msra.mxu0 0.0
      %489 = vmatpush.xpose.msra.mxu0 0.0
      %490 = vmatpush.xpose.msra.mxu0 0.0
      %491 = vmatpush.xpose.msra.mxu0 0.0
      %492 = vmatpush.xpose.msra.mxu0 0.0
      %493 = vmatpush.xpose.msra.mxu0 0.0
      %494 = vmatpush.xpose.msra.mxu0 %v478
      %495 = vmatpush.xpose.msra.mxu0 %v475
      %496 = vmatmul.f32.gmra.mxu0 %v472
      %v497 = vpop.f32.mrf.mxu0
      %v498 = vadd.f32 0.0, %v497
      %499 = vdwg.mxu0
      %v500 = vmul.f32 %v433, %v433
      %v501 = vmul.f32 %v434, %v434
      %v502 = vsel %vm441, %v500, 0.0
      %503 = vadd.xlane.f32.xlu0 %v502
      %v504 = vpop.xlane.xlu0 %503
      %v505 = vsel %vm441, %v501, 0.0
      %506 = vadd.xlane.f32.xlu0 %v505
      %v507 = vpop.xlane.xlu0 %506
      %v508 = vrsqrt.pop %v504
      %v509 = vmul.f32 %v508, %v504
      %v510 = vmul.f32 %v509, %v508
      %v511 = vmul.f32 0.5, %v510
      %v512 = vsub.f32 1.5, %v511
      %v513 = vmul.f32 %v508, %v512
      %v514 = vmul.f32 %v504, %v513
      %vm515 = vcmp.eq.f32.partialorder %v504, inf
      %v516 = vsel %vm515, %v504, %v514
      %vm517 = vcmp.eq.f32.partialorder %v504, 0.0
      %v518 = vand.u32 %v504, 2147483648
      %v519 = vsel %vm517, %v518, %v516
      %v520 = vrsqrt.pop %v507
      %v521 = vmul.f32 %v520, %v507
      %v522 = vmul.f32 %v521, %v520
      %v523 = vmul.f32 0.5, %v522
      %v524 = vsub.f32 1.5, %v523
      %v525 = vmul.f32 %v520, %v524
      %v526 = vmul.f32 %v507, %v525
      %vm527 = vcmp.eq.f32.partialorder %v507, inf
      %v528 = vsel %vm527, %v507, %v526
      %vm529 = vcmp.eq.f32.partialorder %v507, 0.0
      %v530 = vand.u32 %v507, 2147483648
      %v531 = vsel %vm529, %v530, %v528
      %v532 = vadd.f32 %v519, 1e-13
      %v533 = vadd.f32 %v531, 1e-13
      %v534 = vrcp.pop %v532
      %v535 = vmul.f32 %v532, %v534
      %v536 = vsub.f32 1.0, %v535
      %v537 = vmul.f32 %v534, %v536
      %v538 = vadd.f32 %v534, %v537
      %vm539 = vweird.f32 %v532
      %vm540 = vweird.f32 %v534
      %vm541 = vmor %vm539, %vm540
      %v542 = vsel %vm541, %v534, %v538
      %v543 = vand.u32 2147483647, %v532
      %vm544 = vcmp.eq.f32.partialorder %v543, 8.507059e+37
      %v545 = vand.u32 %v532, 2147483648
      %v546 = vor.u32 1.1754944e-38, %v545
      %v547 = vsel %vm544, %v546, %v542
      %v548 = vmul.f32 1.0, %v547
      %v549 = vrcp.pop %v533
      %v550 = vmul.f32 %v533, %v549
      %v551 = vsub.f32 1.0, %v550
      %v552 = vmul.f32 %v549, %v551
      %v553 = vadd.f32 %v549, %v552
      %vm554 = vweird.f32 %v533
      %vm555 = vweird.f32 %v549
      %vm556 = vmor %vm554, %vm555
      %v557 = vsel %vm556, %v549, %v553
      %v558 = vand.u32 2147483647, %v533
      %vm559 = vcmp.eq.f32.partialorder %v558, 8.507059e+37
      %v560 = vand.u32 %v533, 2147483648
      %v561 = vor.u32 1.1754944e-38, %v560
      %v562 = vsel %vm559, %v561, %v557
      %v563 = vmul.f32 1.0, %v562
      %v564 = vmul.f32 %v435, %v435
      %v565 = vmul.f32 %v436, %v436
      %v566 = vmul.f32 %v437, %v437
      %v567 = vmul.f32 %v438, %v438
      %v568 = vsel %vm441, %v564, 0.0
      %569 = vadd.xlane.f32.xlu0 %v568
      %v570 = vpop.xlane.xlu0 %569
      %v571 = vsel %vm441, %v565, 0.0
      %572 = vadd.xlane.f32.xlu0 %v571
      %v573 = vpop.xlane.xlu0 %572
      %v574 = vsel %vm441, %v566, 0.0
      %575 = vadd.xlane.f32.xlu0 %v574
      %v576 = vpop.xlane.xlu0 %575
      %v577 = vsel %vm441, %v567, 0.0
      %578 = vadd.xlane.f32.xlu0 %v577
      %v579 = vpop.xlane.xlu0 %578
      %v580 = vrsqrt.pop %v570
      %v581 = vmul.f32 %v580, %v570
      %v582 = vmul.f32 %v581, %v580
      %v583 = vmul.f32 0.5, %v582
      %v584 = vsub.f32 1.5, %v583
      %v585 = vmul.f32 %v580, %v584
      %v586 = vmul.f32 %v570, %v585
      %vm587 = vcmp.eq.f32.partialorder %v570, inf
      %v588 = vsel %vm587, %v570, %v586
      %vm589 = vcmp.eq.f32.partialorder %v570, 0.0
      %v590 = vand.u32 %v570, 2147483648
      %v591 = vsel %vm589, %v590, %v588
      %v592 = vrsqrt.pop %v573
      %v593 = vmul.f32 %v592, %v573
      %v594 = vmul.f32 %v593, %v592
      %v595 = vmul.f32 0.5, %v594
      %v596 = vsub.f32 1.5, %v595
      %v597 = vmul.f32 %v592, %v596
      %v598 = vmul.f32 %v573, %v597
      %vm599 = vcmp.eq.f32.partialorder %v573, inf
      %v600 = vsel %vm599, %v573, %v598
      %vm601 = vcmp.eq.f32.partialorder %v573, 0.0
      %v602 = vand.u32 %v573, 2147483648
      %v603 = vsel %vm601, %v602, %v600
      %v604 = vrsqrt.pop %v576
      %v605 = vmul.f32 %v604, %v576
      %v606 = vmul.f32 %v605, %v604
      %v607 = vmul.f32 0.5, %v606
      %v608 = vsub.f32 1.5, %v607
      %v609 = vmul.f32 %v604, %v608
      %v610 = vmul.f32 %v576, %v609
      %vm611 = vcmp.eq.f32.partialorder %v576, inf
      %v612 = vsel %vm611, %v576, %v610
      %vm613 = vcmp.eq.f32.partialorder %v576, 0.0
      %v614 = vand.u32 %v576, 2147483648
      %v615 = vsel %vm613, %v614, %v612
      %v616 = vrsqrt.pop %v579
      %v617 = vmul.f32 %v616, %v579
      %v618 = vmul.f32 %v617, %v616
      %v619 = vmul.f32 0.5, %v618
      %v620 = vsub.f32 1.5, %v619
      %v621 = vmul.f32 %v616, %v620
      %v622 = vmul.f32 %v579, %v621
      %vm623 = vcmp.eq.f32.partialorder %v579, inf
      %v624 = vsel %vm623, %v579, %v622
      %vm625 = vcmp.eq.f32.partialorder %v579, 0.0
      %v626 = vand.u32 %v579, 2147483648
      %v627 = vsel %vm625, %v626, %v624
      %v628 = vadd.f32 %v591, 1e-13
      %v629 = vadd.f32 %v603, 1e-13
      %v630 = vadd.f32 %v615, 1e-13
      %v631 = vadd.f32 %v627, 1e-13
      %v632 = vrcp.pop %v628
      %v633 = vmul.f32 %v628, %v632
      %v634 = vsub.f32 1.0, %v633
      %v635 = vmul.f32 %v632, %v634
      %v636 = vadd.f32 %v632, %v635
      %vm637 = vweird.f32 %v628
      %vm638 = vweird.f32 %v632
      %vm639 = vmor %vm637, %vm638
      %v640 = vsel %vm639, %v632, %v636
      %v641 = vand.u32 2147483647, %v628
      %vm642 = vcmp.eq.f32.partialorder %v641, 8.507059e+37
      %v643 = vand.u32 %v628, 2147483648
      %v644 = vor.u32 1.1754944e-38, %v643
      %v645 = vsel %vm642, %v644, %v640
      %v646 = vmul.f32 1.0, %v645
      %v647 = vrcp.pop %v629
      %v648 = vmul.f32 %v629, %v647
      %v649 = vsub.f32 1.0, %v648
      %v650 = vmul.f32 %v647, %v649
      %v651 = vadd.f32 %v647, %v650
      %vm652 = vweird.f32 %v629
      %vm653 = vweird.f32 %v647
      %vm654 = vmor %vm652, %vm653
      %v655 = vsel %vm654, %v647, %v651
      %v656 = vand.u32 2147483647, %v629
      %vm657 = vcmp.eq.f32.partialorder %v656, 8.507059e+37
      %v658 = vand.u32 %v629, 2147483648
      %v659 = vor.u32 1.1754944e-38, %v658
      %v660 = vsel %vm657, %v659, %v655
      %v661 = vmul.f32 1.0, %v660
      %v662 = vrcp.pop %v630
      %v663 = vmul.f32 %v630, %v662
      %v664 = vsub.f32 1.0, %v663
      %v665 = vmul.f32 %v662, %v664
      %v666 = vadd.f32 %v662, %v665
      %vm667 = vweird.f32 %v630
      %vm668 = vweird.f32 %v662
      %vm669 = vmor %vm667, %vm668
      %v670 = vsel %vm669, %v662, %v666
      %v671 = vand.u32 2147483647, %v630
      %vm672 = vcmp.eq.f32.partialorder %v671, 8.507059e+37
      %v673 = vand.u32 %v630, 2147483648
      %v674 = vor.u32 1.1754944e-38, %v673
      %v675 = vsel %vm672, %v674, %v670
      %v676 = vmul.f32 1.0, %v675
      %v677 = vrcp.pop %v631
      %v678 = vmul.f32 %v631, %v677
      %v679 = vsub.f32 1.0, %v678
      %v680 = vmul.f32 %v677, %v679
      %v681 = vadd.f32 %v677, %v680
      %vm682 = vweird.f32 %v631
      %vm683 = vweird.f32 %v677
      %vm684 = vmor %vm682, %vm683
      %v685 = vsel %vm684, %v677, %v681
      %v686 = vand.u32 2147483647, %v631
      %vm687 = vcmp.eq.f32.partialorder %v686, 8.507059e+37
      %v688 = vand.u32 %v631, 2147483648
      %v689 = vor.u32 1.1754944e-38, %v688
      %v690 = vsel %vm687, %v689, %v685
      %v691 = vmul.f32 1.0, %v690
      %v692 = vmul.f32 %v469, %v548
      %v693 = vmul.f32 %v498, %v563
      %v698 = vlaneseq
      %v699 = vand.u32 %v698, 127
      %v700 = vperm.slane %v646, %v699
      %v701 = vadd.s32 %v699, 4294967288
      %v702 = vperm.slane %v661, %v701
      %vm703 = vcmask 130112
      %v704 = vsel %vm703, %v702, %v700
      %v705 = vperm.slane %v676, %v699
      %v706 = vperm.slane %v691, %v701
      %v707 = vsel %vm703, %v706, %v705
      %vm708 = vcmask 1041409
      %vm709 = vcmask 1042434
      %v710 = vsel %vm709, %v704, %v704
      %vm711 = vcmask 1043459
      %v712 = vsel %vm711, %v704, %v710
      %vm713 = vcmask 1044484
      %v714 = vsel %vm713, %v704, %v712
      %vm715 = vcmask 1045509
      %v716 = vsel %vm715, %v704, %v714
      %vm717 = vcmask 1046534
      %v718 = vsel %vm717, %v704, %v716
      %vm719 = vcmask 1047559
      %v720 = vsel %vm719, %v704, %v718
      %v721 = vsel %vm709, %v707, %v707
      %v722 = vsel %vm711, %v707, %v721
      %v723 = vsel %vm713, %v707, %v722
      %v724 = vsel %vm715, %v707, %v723
      %v725 = vsel %vm717, %v707, %v724
      %v726 = vsel %vm719, %v707, %v725
      %v729 = vmul.f32 %v692, %v720
      %v730 = vmul.f32 %v693, %v726
      %v731 = vmax.f32 %v729, -1.0
      %v732 = vmax.f32 %v730, -1.0
      %v733 = vmin.f32 %v731, 1.0
      %v734 = vmin.f32 %v732, 1.0
      %v735 = vadd.f32 %v733, 1.0
      %v736 = vadd.f32 %v734, 1.0
      %v737 = vrcp.pop 0.25
      %v738 = vmul.f32 0.25, %v737
      %v739 = vsub.f32 1.0, %v738
      %v740 = vmul.f32 %v737, %v739
      %v741 = vadd.f32 %v737, %v740
      %vm742 = vweird.f32 %v737
      %v743 = vsel %vm742, %v737, %v741
      %v744 = vmul.f32 %v735, %v743
      %v745 = vmul.f32 %v736, %v743
      %v746 = vfloor.f32 %v744
      %v747 = vfloor.f32 %v745
      %v748 = vcvt.f32.s32.to.zero.pseudo %v746
      %v749 = vcvt.f32.s32.to.zero.pseudo %v747
      %vm750 = vcmp.lt.s32.totalorder %v748, 7
      %v751 = vsel %vm750, %v748, 7
      %vm752 = vcmp.lt.s32.totalorder %v749, 7
      %v753 = vsel %vm752, %v749, 7
      %vm754 = vcmp.eq.s32.totalorder %v751, 0
      %vm755 = vcmp.eq.s32.totalorder %v753, 0
      %v756 = vsel %vm754, 1, 0
      %v757 = vsel %vm755, 1, 0
      %v758 = vcvt.s32.f32 %v756
      %v759 = vcvt.s32.f32 %v757
      %vm760 = vcmask 130048
      %v761 = vsel %vm760, %v758, 0.0
      %762 = vadd.xlane.f32.xlu0 %v761
      %v763 = vpop.xlane.xlu0 %762
      %v764 = vsel %vm760, %v759, 0.0
      %765 = vadd.xlane.f32.xlu0 %v764
      %v766 = vpop.xlane.xlu0 %765
      %vm767 = vcmp.eq.s32.totalorder %v751, 1
      %vm768 = vcmp.eq.s32.totalorder %v753, 1
      %v769 = vsel %vm767, 1, 0
      %v770 = vsel %vm768, 1, 0
      %v771 = vcvt.s32.f32 %v769
      %v772 = vcvt.s32.f32 %v770
      %v773 = vsel %vm760, %v771, 0.0
      %774 = vadd.xlane.f32.xlu0 %v773
      %v775 = vpop.xlane.xlu0 %774
      %v776 = vsel %vm760, %v772, 0.0
      %777 = vadd.xlane.f32.xlu0 %v776
      %v778 = vpop.xlane.xlu0 %777
      %vm779 = vcmp.eq.s32.totalorder %v751, 2
      %vm780 = vcmp.eq.s32.totalorder %v753, 2
      %v781 = vsel %vm779, 1, 0
      %v782 = vsel %vm780, 1, 0
      %v783 = vcvt.s32.f32 %v781
      %v784 = vcvt.s32.f32 %v782
      %v785 = vsel %vm760, %v783, 0.0
      %786 = vadd.xlane.f32.xlu0 %v785
      %v787 = vpop.xlane.xlu0 %786
      %v788 = vsel %vm760, %v784, 0.0
      %789 = vadd.xlane.f32.xlu0 %v788
      %v790 = vpop.xlane.xlu0 %789
      %vm791 = vcmp.eq.s32.totalorder %v751, 3
      %vm792 = vcmp.eq.s32.totalorder %v753, 3
      %v793 = vsel %vm791, 1, 0
      %v794 = vsel %vm792, 1, 0
      %v795 = vcvt.s32.f32 %v793
      %v796 = vcvt.s32.f32 %v794
      %v797 = vsel %vm760, %v795, 0.0
      %798 = vadd.xlane.f32.xlu0 %v797
      %v799 = vpop.xlane.xlu0 %798
      %v800 = vsel %vm760, %v796, 0.0
      %801 = vadd.xlane.f32.xlu0 %v800
      %v802 = vpop.xlane.xlu0 %801
      %vm803 = vcmp.eq.s32.totalorder %v751, 4
      %vm804 = vcmp.eq.s32.totalorder %v753, 4
      %v805 = vsel %vm803, 1, 0
      %v806 = vsel %vm804, 1, 0
      %v807 = vcvt.s32.f32 %v805
      %v808 = vcvt.s32.f32 %v806
      %v809 = vsel %vm760, %v807, 0.0
      %810 = vadd.xlane.f32.xlu0 %v809
      %v811 = vpop.xlane.xlu0 %810
      %v812 = vsel %vm760, %v808, 0.0
      %813 = vadd.xlane.f32.xlu0 %v812
      %v814 = vpop.xlane.xlu0 %813
      %vm815 = vcmp.eq.s32.totalorder %v751, 5
      %vm816 = vcmp.eq.s32.totalorder %v753, 5
      %v817 = vsel %vm815, 1, 0
      %v818 = vsel %vm816, 1, 0
      %v819 = vcvt.s32.f32 %v817
      %v820 = vcvt.s32.f32 %v818
      %v821 = vsel %vm760, %v819, 0.0
      %822 = vadd.xlane.f32.xlu0 %v821
      %v823 = vpop.xlane.xlu0 %822
      %v824 = vsel %vm760, %v820, 0.0
      %825 = vadd.xlane.f32.xlu0 %v824
      %v826 = vpop.xlane.xlu0 %825
      %vm827 = vcmp.eq.s32.totalorder %v751, 6
      %vm828 = vcmp.eq.s32.totalorder %v753, 6
      %v829 = vsel %vm827, 1, 0
      %v830 = vsel %vm828, 1, 0
      %v831 = vcvt.s32.f32 %v829
      %v832 = vcvt.s32.f32 %v830
      %v833 = vsel %vm760, %v831, 0.0
      %834 = vadd.xlane.f32.xlu0 %v833
      %v835 = vpop.xlane.xlu0 %834
      %v836 = vsel %vm760, %v832, 0.0
      %837 = vadd.xlane.f32.xlu0 %v836
      %v838 = vpop.xlane.xlu0 %837
      %vm839 = vcmp.eq.s32.totalorder %v751, 7
      %vm840 = vcmp.eq.s32.totalorder %v753, 7
      %v841 = vsel %vm839, 1, 0
      %v842 = vsel %vm840, 1, 0
      %v843 = vcvt.s32.f32 %v841
      %v844 = vcvt.s32.f32 %v842
      %v845 = vsel %vm760, %v843, 0.0
      %846 = vadd.xlane.f32.xlu0 %v845
      %v847 = vpop.xlane.xlu0 %846
      %v848 = vsel %vm760, %v844, 0.0
      %849 = vadd.xlane.f32.xlu0 %v848
      %v850 = vpop.xlane.xlu0 %849
      %vm851 = vcmask 7168
      %v852 = vsel %vm851, %v763, %v775
      %v853 = vsel %vm851, %v766, %v778
      %vm854 = vcmask 15360
      %v855 = vsel %vm854, %v852, %v787
      %v856 = vsel %vm854, %v853, %v790
      %vm857 = vcmask 23552
      %v858 = vsel %vm857, %v855, %v799
      %v859 = vsel %vm857, %v856, %v802
      %vm860 = vcmask 31744
      %v861 = vsel %vm860, %v858, %v811
      %v862 = vsel %vm860, %v859, %v814
      %vm863 = vcmask 39936
      %v864 = vsel %vm863, %v861, %v823
      %v865 = vsel %vm863, %v862, %v826
      %vm866 = vcmask 48128
      %v867 = vsel %vm866, %v864, %v835
      %v868 = vsel %vm866, %v865, %v838
      %vm869 = vcmask 56320
      %v870 = vsel %vm869, %v867, %v847
      %v871 = vsel %vm869, %v868, %v850
      %v872 = vadd.f32 %v870, 1.0
      %v873 = vlog2.pop %v872
      %v874 = vmul.f32 %v873, 0.6931472
      %v875 = vmul.f32 -0.5, %v870
      %v876 = vadd.f32 %v875, 1.0
      %v877 = vmul.f32 %v876, %v870
      %v878 = vand.u32 2147483647, %v870
      %vm879 = vcmp.lt.f32.partialorder %v878, 0.0004427343
      %v880 = vsel %vm879, %v877, %v874
      %v881 = vadd.f32 %v871, 1.0
      %v882 = vlog2.pop %v881
      %v883 = vmul.f32 %v882, 0.6931472
      %v884 = vmul.f32 -0.5, %v871
      %v885 = vadd.f32 %v884, 1.0
      %v886 = vmul.f32 %v885, %v871
      %v887 = vand.u32 2147483647, %v871
      %vm888 = vcmp.lt.f32.partialorder %v887, 0.0004427343
      %v889 = vsel %vm888, %v886, %v883
      %v890 = vld [vmem:[%s3] sm:$0xff]
      %v891 = vld [vmem:[%s4] sm:$0x1]
      %v893 = vperm.slane %v891, 0
      %vm895 = vcmask 64512
      %v897 = vsel %vm895, %v880, 0
      %v900 = vsel %vm895, %v889, 0
      %902 = vmatpush.msra.mxu0 0.0
      %903 = vmatpush.msra.mxu0 0.0
      %904 = vmatpush.msra.mxu0 0.0
      %905 = vmatpush.msra.mxu0 0.0
      %906 = vmatpush.msra.mxu0 0.0
      %907 = vmatpush.msra.mxu0 0.0
      %908 = vmatpush.msra.mxu0 0.0
      %909 = vmatpush.msra.mxu0 0.0
      %910 = vmatpush.msra.mxu0 0.0
      %911 = vmatpush.msra.mxu0 0.0
      %912 = vmatpush.msra.mxu0 0.0
      %913 = vmatpush.msra.mxu0 0.0
      %914 = vmatpush.msra.mxu0 0.0
      %915 = vmatpush.msra.mxu0 0.0
      %916 = vmatpush.msra.mxu0 0.0
      %917 = vmatpush.msra.mxu0 %v890
      %918 = vmatmul.f32.gmra.mxu0 %v897
      %v919 = vpop.f32.mrf.mxu0
      %v920 = vadd.f32 %v893, %v919
      %921 = vmatmul.f32.gmra.mxu0 %v900
      %v922 = vpop.f32.mrf.mxu0
      %v923 = vadd.f32 %v893, %v922
      %924 = vdwg.mxu0
      %v925 = vtanh.pop %v920
      %v926 = vtanh.pop %v923
      %v927 = vld [vmem:[%s5] sm:$0x1]
      %v929 = vperm.slane %v927, 0
      %v931 = vmul.f32 %v925, %v929
      %v932 = vmul.f32 %v926, %v929
      %v933 = vsel %vm895, %v931, 0.0
      %934 = vadd.xlane.f32.xlu0 %v933
      %v935 = vpop.xlane.xlu0 %934
      %v936 = vsel %vm895, %v932, 0.0
      %937 = vadd.xlane.f32.xlu0 %v936
      %v938 = vpop.xlane.xlu0 %937
      %v939 = vld [vmem:[#allocation2] sm:$0x1]
      %v941 = vperm.slane %v939, 0
      %942 = vset.pattern.permute.xlu0 0
      %943 = vperm.xlu0 %942, %v941
      %v944 = vpop.permute.xlu0 %943
      %v946 = vadd.f32 %v935, %v944
      %v947 = vadd.f32 %v938, %v944
      %v948 = vtanh.pop %v946
      %v949 = vtanh.pop %v947
      %v950 = vld [vmem:[%s7] sm:$0xff]
      %v951 = vld [vmem:[%s7 + $0x8] sm:$0xff]
      %v952 = vld [vmem:[%s7 + $0x10] sm:$0xff]
      %v953 = vld [vmem:[%s7 + $0x18] sm:$0xff]
      %v954 = vld [vmem:[%s8] sm:$0x1]
      %v956 = vperm.slane %v954, 0
      %958 = vmatpush.msra.mxu0 0.0
      %959 = vmatpush.msra.mxu0 0.0
      %960 = vmatpush.msra.mxu0 0.0
      %961 = vmatpush.msra.mxu0 0.0
      %962 = vmatpush.msra.mxu0 0.0
      %963 = vmatpush.msra.mxu0 0.0
      %964 = vmatpush.msra.mxu0 0.0
      %965 = vmatpush.msra.mxu0 0.0
      %966 = vmatpush.msra.mxu0 0.0
      %967 = vmatpush.msra.mxu0 0.0
      %968 = vmatpush.msra.mxu0 0.0
      %969 = vmatpush.msra.mxu0 0.0
      %970 = vmatpush.msra.mxu0 %v953
      %971 = vmatpush.msra.mxu0 %v952
      %972 = vmatpush.msra.mxu0 %v951
      %973 = vmatpush.msra.mxu0 %v950
      %974 = vmatmul.f32.gmra.mxu0 %v443
      %v975 = vpop.f32.mrf.mxu0
      %v976 = vadd.f32 %v956, %v975
      %977 = vmatmul.f32.gmra.mxu0 %v472
      %v978 = vpop.f32.mrf.mxu0
      %v979 = vadd.f32 %v956, %v978
      %980 = vdwg.mxu0
      %v981 = vtanh.pop %v976
      %v982 = vtanh.pop %v979
      %v983 = vld [vmem:[%s9] sm:$0x1]
      %v985 = vperm.slane %v983, 0
      %v987 = vmul.f32 %v981, %v985
      %v988 = vmul.f32 %v982, %v985
      %v989 = vsel %vm441, %v987, 0.0
      %990 = vadd.xlane.f32.xlu0 %v989
      %v991 = vpop.xlane.xlu0 %990
      %v992 = vsel %vm441, %v988, 0.0
      %993 = vadd.xlane.f32.xlu0 %v992
      %v994 = vpop.xlane.xlu0 %993
      %v995 = vld [vmem:[#allocation3] sm:$0x1]
      %v997 = vperm.slane %v995, 0
      %998 = vset.pattern.permute.xlu0 0
      %999 = vperm.xlu0 %998, %v997
      %v1000 = vpop.permute.xlu0 %999
      %v1002 = vadd.f32 %v991, %v1000
      %v1003 = vadd.f32 %v994, %v1000
      %v1004 = vtanh.pop %v1002
      %v1005 = vtanh.pop %v1003
      %vm1006 = vcmp.gt.f32.partialorder %v439, 0.0
      %vm1007 = vcmp.gt.f32.partialorder %v440, 0.0
      %v1010 = vperm.slane %v1004, 0
      %v1011 = vperm.slane %v1004, 1
      %v1012 = vperm.slane %v1004, 2
      %v1013 = vperm.slane %v1004, 3
      %v1014 = vperm.slane %v1004, 4
      %v1015 = vperm.slane %v1004, 5
      %v1016 = vperm.slane %v1004, 6
      %v1017 = vperm.slane %v1004, 7
      %v1018 = vperm.slane %v1005, 0
      %v1019 = vperm.slane %v1005, 1
      %v1020 = vperm.slane %v1005, 2
      %v1021 = vperm.slane %v1005, 3
      %v1022 = vperm.slane %v1005, 4
      %v1023 = vperm.slane %v1005, 5
      %v1024 = vperm.slane %v1005, 6
      %v1025 = vperm.slane %v1005, 7
      %1026 = vst [vmem:[#allocation1] ss:$9 sm:$0xff] %v1010
      %s1027 = scalar_lea.vmem [#allocation1], 1
      %1028 = vst [vmem:[%s1027] ss:$9 sm:$0xff] %v1011
      %s1029 = scalar_lea.vmem [#allocation1], 2
      %1030 = vst [vmem:[%s1029] ss:$9 sm:$0xff] %v1012
      %s1031 = scalar_lea.vmem [#allocation1], 3
      %1032 = vst [vmem:[%s1031] ss:$9 sm:$0xff] %v1013
      %s1033 = scalar_lea.vmem [#allocation1], 4
      %1034 = vst [vmem:[%s1033] ss:$9 sm:$0xff] %v1014
      %s1035 = scalar_lea.vmem [#allocation1], 5
      %1036 = vst [vmem:[%s1035] ss:$9 sm:$0xff] %v1015
      %s1037 = scalar_lea.vmem [#allocation1], 6
      %1038 = vst [vmem:[%s1037] ss:$9 sm:$0xff] %v1016
      %s1039 = scalar_lea.vmem [#allocation1], 7
      %1040 = vst [vmem:[%s1039] ss:$9 sm:$0xff] %v1017
      %v1041 = vld [vmem:[#allocation1] sm:$0xff]
      %1042 = vst [vmem:[#allocation1] ss:$9 sm:$0xff] %v1018
      %1043 = vst [vmem:[%s1027] ss:$9 sm:$0xff] %v1019
      %1044 = vst [vmem:[%s1029] ss:$9 sm:$0xff] %v1020
      %1045 = vst [vmem:[%s1031] ss:$9 sm:$0xff] %v1021
      %1046 = vst [vmem:[%s1033] ss:$9 sm:$0xff] %v1022
      %1047 = vst [vmem:[%s1035] ss:$9 sm:$0xff] %v1023
      %1048 = vst [vmem:[%s1037] ss:$9 sm:$0xff] %v1024
      %1049 = vst [vmem:[%s1039] ss:$9 sm:$0xff] %v1025
      %v1050 = vld [vmem:[#allocation1] sm:$0xff]
      %1051 = vset.pattern.permute.xlu0 0
      %1052 = vperm.xlu0 %1051, %v1041
      %v1053 = vpop.permute.xlu0 %1052
      %1054 = vset.pattern.permute.xlu0 0
      %1055 = vperm.xlu0 %1054, %v1050
      %v1056 = vpop.permute.xlu0 %1055
      %v1057 = vperm.slane %v1053, %v699
      %v1058 = vperm.slane %v1056, %v699
      %v1061 = vsel %vm1006, %v1057, -1e+30
      %v1062 = vsel %vm1007, %v1058, -1e+30
      %1065 = vst [vmem:[#allocation1] ss:$9 sm:$0xff] %v1061
      %s1066 = scalar_lea.vmem [#allocation1], 1
      %1067 = vst [vmem:[%s1066] ss:$9 sm:$0xff] %v1062
      %v1068 = vld [vmem:[#allocation1] sm:$0xff]
      %vm1070 = vcmask 58368
      %v1071 = vsel %vm1070, %v1068, -inf
      %1072 = vmax.xlane.f32.xlu0 %v1071
      %v1073 = vpop.xlane.xlu0 %1072
      %v1075 = vperm.slane %v1073, 0
      %v1076 = vperm.slane %v1073, 1
      %v1079 = vsub.f32 %v1004, %v1075
      %v1080 = vsub.f32 %v1005, %v1076
      %v1081 = vmin.f32 %v1079, 20.0
      %v1082 = vmin.f32 %v1080, 20.0
      %v1083 = vmul.f32 %v1081, 1.442695
      %v1084 = vpow.pop %v1083
      %v1085 = vmul.f32 %v1082, 1.442695
      %v1086 = vpow.pop %v1085
      %v1089 = vperm.slane %v439, 0
      %v1090 = vperm.slane %v440, 0
      %v1091 = vlaneseq
      %v1092 = vshrl.u32 %v1091, 7
      %1094 = vset.pattern.permute.xlu0 %v1092
      %1095 = vperm.xlu0 %1094, %v1089
      %v1096 = vpop.permute.xlu0 %1095
      %v1097 = vlaneseq
      %v1098 = vshrl.u32 %v1097, 7
      %1100 = vset.pattern.permute.xlu0 %v1098
      %1101 = vperm.xlu0 %1100, %v1090
      %v1102 = vpop.permute.xlu0 %1101
      %v1105 = vmul.f32 %v1084, %v1096
      %v1106 = vmul.f32 %v1086, %v1102
      %1109 = vset.pattern.permute.xlu0 0
      %1110 = vperm.xlu0 %1109, %v1105
      %v1111 = vpop.permute.xlu0 %1110
      %1112 = vset.pattern.permute.xlu0 0
      %1113 = vperm.xlu0 %1112, %v1106
      %v1114 = vpop.permute.xlu0 %1113
      %v1115 = vperm.slane %v1111, %v699
      %v1116 = vperm.slane %v1114, %v699
      %v1117 = vsel %vm708, %v1116, %v1115
      %v1119 = vsel %vm1070, %v1117, 0.0
      %1120 = vadd.xlane.f32.xlu0 %v1119
      %v1121 = vpop.xlane.xlu0 %1120
      %v1122 = vmax.f32 %v1121, 1e-13
      %v1124 = vperm.slane %v1122, 0
      %v1125 = vperm.slane %v1122, 1
      %v1128 = vrcp.pop %v1124
      %v1129 = vmul.f32 %v1124, %v1128
      %v1130 = vsub.f32 1.0, %v1129
      %v1131 = vmul.f32 %v1128, %v1130
      %v1132 = vadd.f32 %v1128, %v1131
      %vm1133 = vweird.f32 %v1124
      %vm1134 = vweird.f32 %v1128
      %vm1135 = vmor %vm1133, %vm1134
      %v1136 = vsel %vm1135, %v1128, %v1132
      %v1137 = vand.u32 2147483647, %v1124
      %vm1138 = vcmp.eq.f32.partialorder %v1137, 8.507059e+37
      %v1139 = vand.u32 %v1124, 2147483648
      %v1140 = vor.u32 1.1754944e-38, %v1139
      %v1141 = vsel %vm1138, %v1140, %v1136
      %v1142 = vmul.f32 %v1105, %v1141
      %v1143 = vrcp.pop %v1125
      %v1144 = vmul.f32 %v1125, %v1143
      %v1145 = vsub.f32 1.0, %v1144
      %v1146 = vmul.f32 %v1143, %v1145
      %v1147 = vadd.f32 %v1143, %v1146
      %vm1148 = vweird.f32 %v1125
      %vm1149 = vweird.f32 %v1143
      %vm1150 = vmor %vm1148, %vm1149
      %v1151 = vsel %vm1150, %v1143, %v1147
      %v1152 = vand.u32 2147483647, %v1125
      %vm1153 = vcmp.eq.f32.partialorder %v1152, 8.507059e+37
      %v1154 = vand.u32 %v1125, 2147483648
      %v1155 = vor.u32 1.1754944e-38, %v1154
      %v1156 = vsel %vm1153, %v1155, %v1151
      %v1157 = vmul.f32 %v1106, %v1156
      %v1158 = vmul.f32 %v948, %v1142
      %v1159 = vmul.f32 %v949, %v1157
      %1162 = vset.pattern.permute.xlu0 0
      %1163 = vperm.xlu0 %1162, %v1158
      %v1164 = vpop.permute.xlu0 %1163
      %1165 = vset.pattern.permute.xlu0 0
      %1166 = vperm.xlu0 %1165, %v1159
      %v1167 = vpop.permute.xlu0 %1166
      %v1168 = vperm.slane %v1164, %v699
      %v1169 = vperm.slane %v1167, %v699
      %v1170 = vsel %vm708, %v1169, %v1168
      %v1172 = vsel %vm1070, %v1170, 0.0
      %1173 = vadd.xlane.f32.xlu0 %v1172
      %v1174 = vpop.xlane.xlu0 %1173
      %v1176 = vperm.slane %v1174, %v699
      %vm1178 = vcmask 8192
      %1179 = vst.msk [vmem:[%s432] sm:$0x1] %vm1178, %v1176
      %p1180 = scmp.lt.s32.totalorder %s26, 1
      %s1181 = scalar_select %p1180, %s26, 1
      %s1182 = scalar_lea.vmem %s11, %s1181
      // Predicated region
      $region65: #{drmm_forward.1} parent=63 // pred_check
        %p1183 = pneg %p290
      $region66: #{drmm_forward.1} parent=63 // pred_check_branch
        %1185 = sbr.rel (%p1183) target = $region68
      $region67: #{drmm_forward.1} parent=63 // pred_region
        _
      $region68: #{drmm_forward.1} parent=63 // pred_fallthru
        _
    $region64: #{drmm_forward.1} parent=5 // pred_fallthru
      _
    %p1186 = scmp.le.s32.totalorder 2, %s21
    // Predicated region
    $region69: #{drmm_forward.1} parent=5 // pred_check
      %p1187 = pneg %p1186
    $region70: #{drmm_forward.1} parent=5 // pred_check_branch
      %1189 = sbr.rel (%p1187) target = $region72
    $region71: #{drmm_forward.1} parent=5 // pred_region
      %s1190 = ssub.s32 %s21, 2
      // Predicated region
      $region73: #{drmm_forward.1} parent=71 // pred_check
        %p1191 = pneg %p296
      $region74: #{drmm_forward.1} parent=71 // pred_check_branch
        %1193 = sbr.rel (%p1191) target = $region76
      $region75: #{drmm_forward.1} parent=71 // pred_region
        %p1194 = scmp.lt.s32.totalorder %s27, 1
        %s1195 = scalar_select %p1194, %s27, 1
        %s1196 = scalar_lea.vmem %s11, %s1195
      $region76: #{drmm_forward.1} parent=71 // pred_fallthru
        _
    $region72: #{drmm_forward.1} parent=5 // pred_fallthru
      _
  $region6: #{drmm_forward.1} parent=0 // loop_footer
    %s25 = sadd.s32 1, %s21
  $region7: #{drmm_forward.1} parent=0 // loop_footer_branch
    %20 = sbr.rel target = $region3
  $region8: #{drmm_forward.1} parent=0 // loop_exit
    _

</llo_original>
